<compile_context>
chip_gen: v7x
topology: tpu7x:2x2x1
jax: 0.10.0
libtpu: 0.0.40
codegen_flags: <defaults>
</compile_context>

<pallas_src>
import math

import jax
import jax.numpy as jnp
from jax import lax
from jax.experimental import pallas as pl
from jax.experimental.pallas import tpu as pltpu


def _round_up(v, m):
    return ((v + m - 1) // m) * m


def _make_rnn_kernel(n_layers, b_tile, seq_len, in_pad, h_pad, o_pad):
    """Kernel body for one batch tile. Layer loop statically unrolled (n_layers small);
    time loop is a fori_loop (unrolled when short)."""
    T, Bt, Ip, Hp = seq_len, b_tile, in_pad, h_pad

    def kernel(*refs):
        idx = 0
        x_ref = refs[idx]; idx += 1
        layers = []
        for _ in range(n_layers):
            layers.append(refs[idx:idx + 3])          # (w_ih^T, w_hh^T, fused bias), lane-padded
            idx += 3
        wfc_ref = refs[idx]; bfc_ref = refs[idx + 1]; idx += 2
        out_ref = refs[idx]; hid_ref = refs[idx + 1]; idx += 2
        seq_ref = refs[idx]                            # VMEM scratch (T, Bt, Hp), time-major

        for l, (wih_ref, whh_ref, b_ref) in enumerate(layers):
            # ---- hoisted input projection over the whole (time, batch-tile) slab ----
            if l == 0:
                inp_flat = x_ref[...].reshape(T * Bt, Ip)     # row = t*Bt + b (layout-preserving)
            else:
                inp_flat = seq_ref[...].reshape(T * Bt, Hp)   # previous layer's outputs
            pre = (jnp.dot(inp_flat, wih_ref[...],
                           preferred_element_type=jnp.float32)
                   + b_ref[...])
            # Park the projection in VMEM so the time loop only keeps (Bt, Hp) live in vregs.
            seq_ref[...] = pre.reshape(T, Bt, Hp)

            whh_t = whh_ref[...]                              # (Hp, Hp), already W_hh^T

            # ---- serial recurrence: read pre[t] from VMEM, overwrite with h[t] ----
            def step(t, h):
                h_new = jnp.maximum(
                    seq_ref[t]
                    + jnp.dot(h, whh_t, preferred_element_type=jnp.float32),
                    0.0)                                      # nonlinearity='relu'
                seq_ref[t] = h_new                            # contiguous full-vreg slab store
                return h_new

            h_final = lax.fori_loop(0, T, step,
                                    jnp.zeros((Bt, Hp), jnp.float32),
                                    unroll=(T <= 32))
            hid_ref[l] = h_final                              # final hidden state of layer l

        # ---- final Linear over all T*Bt rows in a single lane-dense matmul ----
        feats = seq_ref[...].reshape(T * Bt, Hp)
        out = (jnp.dot(feats, wfc_ref[...], preferred_element_type=jnp.float32)
               + bfc_ref[...])
        out_ref[...] = out.reshape(T, Bt, o_pad)

    return kernel


def rnn_model_forward(x, params, *, n_layers, hidden_dim, output_size, b_tile=None):
    B, T, input_size = x.shape
    H = hidden_dim
    LANE, SUB = 128, 8
    f32 = jnp.float32

    # ---- padded sizes: lane-dense features, sublane-dense batch ----
    Hp = _round_up(H, LANE)
    Ip = _round_up(input_size, LANE)
    Op = _round_up(output_size, LANE)
    if b_tile is None:
        b_tile = min(_round_up(B, SUB), 64)
    b_tile = _round_up(b_tile, SUB)
    Bp = _round_up(B, b_tile)
    num_tiles = Bp // b_tile

    # ---- host-side packing ----
    # x -> (T, Bp, Ip): time-major so per-step scratch access is a contiguous (Bt, Hp) slab.
    x_tm = jnp.transpose(x.astype(f32), (1, 0, 2))
    x_pad = jnp.zeros((T, Bp, Ip), f32).at[:, :B, :input_size].set(x_tm)

    weights = []
    for l in range(n_layers):
        wih, whh, bih, bhh = params["rnn"][l]
        in_dim = input_size if l == 0 else H
        in_pad = Ip if l == 0 else Hp
        wih_t = jnp.zeros((in_pad, Hp), f32).at[:in_dim, :H].set(wih.T)      # (in_pad, Hp)
        whh_t = jnp.zeros((Hp, Hp), f32).at[:H, :H].set(whh.T)               # (Hp, Hp)
        bias = jnp.zeros((1, Hp), f32).at[0, :H].set(bih + bhh)              # fused bias
        weights += [wih_t, whh_t, bias]
    fc_w = jnp.zeros((Hp, Op), f32).at[:H, :output_size].set(params["fc_w"].T)
    fc_b = jnp.zeros((1, Op), f32).at[0, :output_size].set(params["fc_b"])
    weights += [fc_w, fc_b]

    kernel = _make_rnn_kernel(n_layers, b_tile, T, Ip, Hp, Op)

    # ---- advisory cost estimate ----
    flops = 0
    for l in range(n_layers):
        in_pad = Ip if l == 0 else Hp
        flops += 2 * Bp * T * in_pad * Hp      # hoisted input projection
        flops += 2 * Bp * T * Hp * Hp          # recurrent matmuls
    flops += 2 * Bp * T * Hp * Op              # final Linear
    bytes_accessed = (int(x_pad.size) + sum(int(w.size) for w in weights)
                      + T * Bp * Op + n_layers * Bp * Hp) * 4

    # ---- explicit VMEM budget: resident weights + double-buffered tiles + scratch ----
    weight_bytes = sum(int(w.size) for w in weights) * 4
    tile_bytes = (T * b_tile * Ip + T * b_tile * Op + n_layers * b_tile * Hp) * 4
    scratch_bytes = T * b_tile * Hp * 4
    vmem_limit = int(min(48 << 20,
                         max(2 * (weight_bytes + 2 * tile_bytes + scratch_bytes), 8 << 20)))

    in_specs = [pl.BlockSpec((T, b_tile, Ip), lambda i: (0, i, 0))]           # x: tiled over batch
    in_specs += [pl.BlockSpec(w.shape, lambda i: (0, 0)) for w in weights]    # weights: resident
    out_specs = (pl.BlockSpec((T, b_tile, Op), lambda i: (0, i, 0)),
                 pl.BlockSpec((n_layers, b_tile, Hp), lambda i: (0, i, 0)))

    out_pad, hid_pad = pl.pallas_call(
        kernel,
        out_shape=(jax.ShapeDtypeStruct((T, Bp, Op), f32),
                   jax.ShapeDtypeStruct((n_layers, Bp, Hp), f32)),
        grid_spec=pltpu.PrefetchScalarGridSpec(
            num_scalar_prefetch=0,
            grid=(num_tiles,),
            in_specs=in_specs,
            out_specs=out_specs,
            scratch_shapes=[pltpu.VMEM((T, b_tile, Hp), f32)]),
        compiler_params=pltpu.CompilerParams(
            dimension_semantics=("parallel",),
            vmem_limit_bytes=vmem_limit),
        cost_estimate=pl.CostEstimate(flops=flops, transcendentals=0,
                                      bytes_accessed=bytes_accessed),
    )(x_pad, *weights)

    # Restore torch's row order (b*T + t) and strip all padding in the wrapper.
    out = jnp.transpose(out_pad, (1, 0, 2))[:B].reshape(B * T, Op)[:, :output_size]
    hidden = hid_pad[:, :B, :H]
    return out, hidden


def init_params(key, input_size, output_size, hidden_dim, n_layers):
    """Deterministic init matching PyTorch nn.RNN / nn.Linear shapes
    (uniform(-1/sqrt(H), 1/sqrt(H)))."""
    params = {"rnn": []}
    k_rnn = 1.0 / math.sqrt(hidden_dim)
    for l in range(n_layers):
        in_dim = input_size if l == 0 else hidden_dim
        key, k1, k2, k3, k4 = jax.random.split(key, 5)
        wih = jax.random.uniform(k1, (hidden_dim, in_dim), jnp.float32, -k_rnn, k_rnn)
        whh = jax.random.uniform(k2, (hidden_dim, hidden_dim), jnp.float32, -k_rnn, k_rnn)
        bih = jax.random.uniform(k3, (hidden_dim,), jnp.float32, -k_rnn, k_rnn)
        bhh = jax.random.uniform(k4, (hidden_dim,), jnp.float32, -k_rnn, k_rnn)
        params["rnn"].append((wih, whh, bih, bhh))
    key, k5, k6 = jax.random.split(key, 3)
    k_fc = 1.0 / math.sqrt(hidden_dim)
    params["fc_w"] = jax.random.uniform(k5, (output_size, hidden_dim), jnp.float32, -k_fc, k_fc)
    params["fc_b"] = jax.random.uniform(k6, (output_size,), jnp.float32, -k_fc, k_fc)
    return params


def reference_forward(x, params, *, n_layers, hidden_dim, output_size):
    """Pure-JAX reference mirroring torch.nn.RNN semantics (for validation)."""
    B, T, _ = x.shape
    layer_in = x
    finals = []
    for l in range(n_layers):
        wih, whh, bih, bhh = params["rnn"][l]
        h = jnp.zeros((B, hidden_dim), jnp.float32)
        outs = []
        for t in range(T):
            h = jnp.maximum(layer_in[:, t, :] @ wih.T + bih + h @ whh.T + bhh, 0.0)
            outs.append(h)
        layer_in = jnp.stack(outs, axis=1)
        finals.append(h)
    out = layer_in.reshape(B * T, hidden_dim) @ params["fc_w"].T + params["fc_b"]
    return out, jnp.stack(finals, axis=0)


if __name__ == "__main__":
    # Small, forward-consistent shapes.
    batch, seq, input_size = 2, 8, 16
    hidden_dim, output_size, n_layers = 32, 10, 2

    key = jax.random.PRNGKey(0)
    key, kx = jax.random.split(key)
    x = jax.random.normal(kx, (batch, seq, input_size), jnp.float32)

    params = init_params(key, input_size, output_size, hidden_dim, n_layers)

    out, hidden = rnn_model_forward(
        x, params, n_layers=n_layers, hidden_dim=hidden_dim, output_size=output_size)
    out = jax.block_until_ready(out)
    hidden = jax.block_until_ready(hidden)

    ref_out, ref_hidden = reference_forward(
        x, params, n_layers=n_layers, hidden_dim=hidden_dim, output_size=output_size)

    assert out.shape == (batch * seq, output_size)
    assert hidden.shape == (n_layers, batch, hidden_dim)
    # Accumulation order differs slightly from the reference (hoisted projection, fused bias),
    # so use a slightly relaxed but still tight f32 tolerance.
    assert jnp.allclose(out, ref_out, atol=1e-4, rtol=1e-4)
    assert jnp.allclose(hidden, ref_hidden, atol=1e-4, rtol=1e-4)

    print("KERNEL_OK")
</pallas_src>

<mosaic_0001>
module attributes {stable_mosaic.version = 11 : i64} {
  func.func @kernel(%arg0: i32, %arg1: memref<8x8x128xf32, #tpu.memory_space<vmem>>, %arg2: memref<128x128xf32, #tpu.memory_space<vmem>>, %arg3: memref<128x128xf32, #tpu.memory_space<vmem>>, %arg4: memref<1x128xf32, #tpu.memory_space<vmem>>, %arg5: memref<128x128xf32, #tpu.memory_space<vmem>>, %arg6: memref<128x128xf32, #tpu.memory_space<vmem>>, %arg7: memref<1x128xf32, #tpu.memory_space<vmem>>, %arg8: memref<128x128xf32, #tpu.memory_space<vmem>>, %arg9: memref<1x128xf32, #tpu.memory_space<vmem>>, %arg10: memref<8x8x128xf32, #tpu.memory_space<vmem>>, %arg11: memref<2x8x128xf32, #tpu.memory_space<vmem>>, %arg12: memref<8x8x128xf32, #tpu.memory_space<vmem>>) attributes {dimension_semantics = [#tpu.dimension_semantics<parallel>], iteration_bounds = array<i64: 1>, scalar_prefetch = 0 : i64, scratch_operands = 1 : i64, tpu.core_type = #tpu.core_type<tc>, window_params = [{transform_indices = @transform_0, window_bounds = array<i64: 8, 8, 128>}, {pipeline_mode = #tpu.pipeline_mode<synchronous>, transform_indices = @transform_1, window_bounds = array<i64: 128, 128>}, {pipeline_mode = #tpu.pipeline_mode<synchronous>, transform_indices = @transform_2, window_bounds = array<i64: 128, 128>}, {pipeline_mode = #tpu.pipeline_mode<synchronous>, transform_indices = @transform_3, window_bounds = array<i64: 1, 128>}, {pipeline_mode = #tpu.pipeline_mode<synchronous>, transform_indices = @transform_4, window_bounds = array<i64: 128, 128>}, {pipeline_mode = #tpu.pipeline_mode<synchronous>, transform_indices = @transform_5, window_bounds = array<i64: 128, 128>}, {pipeline_mode = #tpu.pipeline_mode<synchronous>, transform_indices = @transform_6, window_bounds = array<i64: 1, 128>}, {pipeline_mode = #tpu.pipeline_mode<synchronous>, transform_indices = @transform_7, window_bounds = array<i64: 128, 128>}, {pipeline_mode = #tpu.pipeline_mode<synchronous>, transform_indices = @transform_8, window_bounds = array<i64: 1, 128>}, {transform_indices = @transform_9, window_bounds = array<i64: 8, 8, 128>}, {transform_indices = @transform_10, window_bounds = array<i64: 2, 8, 128>}]} {
    %c0 = arith.constant 0 : index
    %c0_0 = arith.constant 0 : index
    %c0_1 = arith.constant 0 : index
    %0 = vector.load %arg1[%c0, %c0_0, %c0_1] : memref<8x8x128xf32, #tpu.memory_space<vmem>>, vector<8x8x128xf32>
    %1 = vector.shape_cast %0 : vector<8x8x128xf32> to vector<64x128xf32>
    %c0_2 = arith.constant 0 : index
    %c0_3 = arith.constant 0 : index
    %2 = vector.load %arg2[%c0_2, %c0_3] : memref<128x128xf32, #tpu.memory_space<vmem>>, vector<128x128xf32>
    %cst = arith.constant dense<0.000000e+00> : vector<64x128xf32>
    %3 = tpu.matmul %1, %2, %cst {dimension_numbers = #tpu.dot_dimension_numbers<[1], [0], [0], [1], [0, 0, 1, 1], [], []>} : vector<64x128xf32>, vector<128x128xf32>, vector<64x128xf32> -> vector<64x128xf32>
    %c0_4 = arith.constant 0 : index
    %c0_5 = arith.constant 0 : index
    %4 = vector.load %arg4[%c0_4, %c0_5] : memref<1x128xf32, #tpu.memory_space<vmem>>, vector<1x128xf32>
    %5 = vector.broadcast %4 : vector<1x128xf32> to vector<64x128xf32>
    %6 = arith.addf %3, %5 : vector<64x128xf32>
    %7 = vector.shape_cast %6 : vector<64x128xf32> to vector<8x8x128xf32>
    %c0_6 = arith.constant 0 : index
    %c0_7 = arith.constant 0 : index
    %c0_8 = arith.constant 0 : index
    %8 = vector.load %arg12[%c0_6, %c0_7, %c0_8] : memref<8x8x128xf32, #tpu.memory_space<vmem>>, vector<8x8x128xf32>
    tpu.vector_store %arg12[%c0_6, %c0_7, %c0_8], %7 {strides = array<i32>} : memref<8x8x128xf32, #tpu.memory_space<vmem>>, vector<8x8x128xf32>,
    %c0_9 = arith.constant 0 : index
    %c0_10 = arith.constant 0 : index
    %9 = vector.load %arg3[%c0_9, %c0_10] : memref<128x128xf32, #tpu.memory_space<vmem>>, vector<128x128xf32>
    %cst_11 = arith.constant 0.000000e+00 : f32
    %10 = vector.broadcast %cst_11 : f32 to vector<8x128xf32>
    %c0_i32 = arith.constant 0 : i32
    %11 = arith.index_cast %c0_i32 : i32 to index
    %c0_12 = arith.constant 0 : index
    %c0_13 = arith.constant 0 : index
    %12 = vector.load %arg12[%11, %c0_12, %c0_13] : memref<8x8x128xf32, #tpu.memory_space<vmem>>, vector<1x8x128xf32>
    %13 = vector.shape_cast %12 : vector<1x8x128xf32> to vector<8x128xf32>
    %cst_14 = arith.constant dense<0.000000e+00> : vector<8x128xf32>
    %14 = tpu.matmul %10, %9, %cst_14 {dimension_numbers = #tpu.dot_dimension_numbers<[1], [0], [0], [1], [0, 0, 1, 1], [], []>} : vector<8x128xf32>, vector<128x128xf32>, vector<8x128xf32> -> vector<8x128xf32>
    %15 = arith.addf %13, %14 : vector<8x128xf32>
    %cst_15 = arith.constant 0.000000e+00 : f32
    %16 = vector.broadcast %cst_15 : f32 to vector<8x128xf32>
    %17 = arith.maximumf %15, %16 : vector<8x128xf32>
    %18 = arith.index_cast %c0_i32 : i32 to index
    %c0_16 = arith.constant 0 : index
    %c0_17 = arith.constant 0 : index
    %19 = vector.load %arg12[%18, %c0_16, %c0_17] : memref<8x8x128xf32, #tpu.memory_space<vmem>>, vector<1x8x128xf32>
    %20 = vector.shape_cast %19 : vector<1x8x128xf32> to vector<8x128xf32>
    %21 = vector.shape_cast %17 : vector<8x128xf32> to vector<1x8x128xf32>
    tpu.vector_store %arg12[%18, %c0_16, %c0_17], %21 {strides = array<i32>} : memref<8x8x128xf32, #tpu.memory_space<vmem>>, vector<1x8x128xf32>,
    %c1_i32 = arith.constant 1 : i32
    %22 = arith.index_cast %c1_i32 : i32 to index
    %c0_18 = arith.constant 0 : index
    %c0_19 = arith.constant 0 : index
    %23 = vector.load %arg12[%22, %c0_18, %c0_19] : memref<8x8x128xf32, #tpu.memory_space<vmem>>, vector<1x8x128xf32>
    %24 = vector.shape_cast %23 : vector<1x8x128xf32> to vector<8x128xf32>
    %cst_20 = arith.constant dense<0.000000e+00> : vector<8x128xf32>
    %25 = tpu.matmul %17, %9, %cst_20 {dimension_numbers = #tpu.dot_dimension_numbers<[1], [0], [0], [1], [0, 0, 1, 1], [], []>} : vector<8x128xf32>, vector<128x128xf32>, vector<8x128xf32> -> vector<8x128xf32>
    %26 = arith.addf %24, %25 : vector<8x128xf32>
    %cst_21 = arith.constant 0.000000e+00 : f32
    %27 = vector.broadcast %cst_21 : f32 to vector<8x128xf32>
    %28 = arith.maximumf %26, %27 : vector<8x128xf32>
    %29 = arith.index_cast %c1_i32 : i32 to index
    %c0_22 = arith.constant 0 : index
    %c0_23 = arith.constant 0 : index
    %30 = vector.load %arg12[%29, %c0_22, %c0_23] : memref<8x8x128xf32, #tpu.memory_space<vmem>>, vector<1x8x128xf32>
    %31 = vector.shape_cast %30 : vector<1x8x128xf32> to vector<8x128xf32>
    %32 = vector.shape_cast %28 : vector<8x128xf32> to vector<1x8x128xf32>
    tpu.vector_store %arg12[%29, %c0_22, %c0_23], %32 {strides = array<i32>} : memref<8x8x128xf32, #tpu.memory_space<vmem>>, vector<1x8x128xf32>,
    %c2_i32 = arith.constant 2 : i32
    %33 = arith.index_cast %c2_i32 : i32 to index
    %c0_24 = arith.constant 0 : index
    %c0_25 = arith.constant 0 : index
    %34 = vector.load %arg12[%33, %c0_24, %c0_25] : memref<8x8x128xf32, #tpu.memory_space<vmem>>, vector<1x8x128xf32>
    %35 = vector.shape_cast %34 : vector<1x8x128xf32> to vector<8x128xf32>
    %cst_26 = arith.constant dense<0.000000e+00> : vector<8x128xf32>
    %36 = tpu.matmul %28, %9, %cst_26 {dimension_numbers = #tpu.dot_dimension_numbers<[1], [0], [0], [1], [0, 0, 1, 1], [], []>} : vector<8x128xf32>, vector<128x128xf32>, vector<8x128xf32> -> vector<8x128xf32>
    %37 = arith.addf %35, %36 : vector<8x128xf32>
    %cst_27 = arith.constant 0.000000e+00 : f32
    %38 = vector.broadcast %cst_27 : f32 to vector<8x128xf32>
    %39 = arith.maximumf %37, %38 : vector<8x128xf32>
    %40 = arith.index_cast %c2_i32 : i32 to index
    %c0_28 = arith.constant 0 : index
    %c0_29 = arith.constant 0 : index
    %41 = vector.load %arg12[%40, %c0_28, %c0_29] : memref<8x8x128xf32, #tpu.memory_space<vmem>>, vector<1x8x128xf32>
    %42 = vector.shape_cast %41 : vector<1x8x128xf32> to vector<8x128xf32>
    %43 = vector.shape_cast %39 : vector<8x128xf32> to vector<1x8x128xf32>
    tpu.vector_store %arg12[%40, %c0_28, %c0_29], %43 {strides = array<i32>} : memref<8x8x128xf32, #tpu.memory_space<vmem>>, vector<1x8x128xf32>,
    %c3_i32 = arith.constant 3 : i32
    %44 = arith.index_cast %c3_i32 : i32 to index
    %c0_30 = arith.constant 0 : index
    %c0_31 = arith.constant 0 : index
    %45 = vector.load %arg12[%44, %c0_30, %c0_31] : memref<8x8x128xf32, #tpu.memory_space<vmem>>, vector<1x8x128xf32>
    %46 = vector.shape_cast %45 : vector<1x8x128xf32> to vector<8x128xf32>
    %cst_32 = arith.constant dense<0.000000e+00> : vector<8x128xf32>
    %47 = tpu.matmul %39, %9, %cst_32 {dimension_numbers = #tpu.dot_dimension_numbers<[1], [0], [0], [1], [0, 0, 1, 1], [], []>} : vector<8x128xf32>, vector<128x128xf32>, vector<8x128xf32> -> vector<8x128xf32>
    %48 = arith.addf %46, %47 : vector<8x128xf32>
    %cst_33 = arith.constant 0.000000e+00 : f32
    %49 = vector.broadcast %cst_33 : f32 to vector<8x128xf32>
    %50 = arith.maximumf %48, %49 : vector<8x128xf32>
    %51 = arith.index_cast %c3_i32 : i32 to index
    %c0_34 = arith.constant 0 : index
    %c0_35 = arith.constant 0 : index
    %52 = vector.load %arg12[%51, %c0_34, %c0_35] : memref<8x8x128xf32, #tpu.memory_space<vmem>>, vector<1x8x128xf32>
    %53 = vector.shape_cast %52 : vector<1x8x128xf32> to vector<8x128xf32>
    %54 = vector.shape_cast %50 : vector<8x128xf32> to vector<1x8x128xf32>
    tpu.vector_store %arg12[%51, %c0_34, %c0_35], %54 {strides = array<i32>} : memref<8x8x128xf32, #tpu.memory_space<vmem>>, vector<1x8x128xf32>,
    %c4_i32 = arith.constant 4 : i32
    %55 = arith.index_cast %c4_i32 : i32 to index
    %c0_36 = arith.constant 0 : index
    %c0_37 = arith.constant 0 : index
    %56 = vector.load %arg12[%55, %c0_36, %c0_37] : memref<8x8x128xf32, #tpu.memory_space<vmem>>, vector<1x8x128xf32>
    %57 = vector.shape_cast %56 : vector<1x8x128xf32> to vector<8x128xf32>
    %cst_38 = arith.constant dense<0.000000e+00> : vector<8x128xf32>
    %58 = tpu.matmul %50, %9, %cst_38 {dimension_numbers = #tpu.dot_dimension_numbers<[1], [0], [0], [1], [0, 0, 1, 1], [], []>} : vector<8x128xf32>, vector<128x128xf32>, vector<8x128xf32> -> vector<8x128xf32>
    %59 = arith.addf %57, %58 : vector<8x128xf32>
    %cst_39 = arith.constant 0.000000e+00 : f32
    %60 = vector.broadcast %cst_39 : f32 to vector<8x128xf32>
    %61 = arith.maximumf %59, %60 : vector<8x128xf32>
    %62 = arith.index_cast %c4_i32 : i32 to index
    %c0_40 = arith.constant 0 : index
    %c0_41 = arith.constant 0 : index
    %63 = vector.load %arg12[%62, %c0_40, %c0_41] : memref<8x8x128xf32, #tpu.memory_space<vmem>>, vector<1x8x128xf32>
    %64 = vector.shape_cast %63 : vector<1x8x128xf32> to vector<8x128xf32>
    %65 = vector.shape_cast %61 : vector<8x128xf32> to vector<1x8x128xf32>
    tpu.vector_store %arg12[%62, %c0_40, %c0_41], %65 {strides = array<i32>} : memref<8x8x128xf32, #tpu.memory_space<vmem>>, vector<1x8x128xf32>,
    %c5_i32 = arith.constant 5 : i32
    %66 = arith.index_cast %c5_i32 : i32 to index
    %c0_42 = arith.constant 0 : index
    %c0_43 = arith.constant 0 : index
    %67 = vector.load %arg12[%66, %c0_42, %c0_43] : memref<8x8x128xf32, #tpu.memory_space<vmem>>, vector<1x8x128xf32>
    %68 = vector.shape_cast %67 : vector<1x8x128xf32> to vector<8x128xf32>
    %cst_44 = arith.constant dense<0.000000e+00> : vector<8x128xf32>
    %69 = tpu.matmul %61, %9, %cst_44 {dimension_numbers = #tpu.dot_dimension_numbers<[1], [0], [0], [1], [0, 0, 1, 1], [], []>} : vector<8x128xf32>, vector<128x128xf32>, vector<8x128xf32> -> vector<8x128xf32>
    %70 = arith.addf %68, %69 : vector<8x128xf32>
    %cst_45 = arith.constant 0.000000e+00 : f32
    %71 = vector.broadcast %cst_45 : f32 to vector<8x128xf32>
    %72 = arith.maximumf %70, %71 : vector<8x128xf32>
    %73 = arith.index_cast %c5_i32 : i32 to index
    %c0_46 = arith.constant 0 : index
    %c0_47 = arith.constant 0 : index
    %74 = vector.load %arg12[%73, %c0_46, %c0_47] : memref<8x8x128xf32, #tpu.memory_space<vmem>>, vector<1x8x128xf32>
    %75 = vector.shape_cast %74 : vector<1x8x128xf32> to vector<8x128xf32>
    %76 = vector.shape_cast %72 : vector<8x128xf32> to vector<1x8x128xf32>
    tpu.vector_store %arg12[%73, %c0_46, %c0_47], %76 {strides = array<i32>} : memref<8x8x128xf32, #tpu.memory_space<vmem>>, vector<1x8x128xf32>,
    %c6_i32 = arith.constant 6 : i32
    %77 = arith.index_cast %c6_i32 : i32 to index
    %c0_48 = arith.constant 0 : index
    %c0_49 = arith.constant 0 : index
    %78 = vector.load %arg12[%77, %c0_48, %c0_49] : memref<8x8x128xf32, #tpu.memory_space<vmem>>, vector<1x8x128xf32>
    %79 = vector.shape_cast %78 : vector<1x8x128xf32> to vector<8x128xf32>
    %cst_50 = arith.constant dense<0.000000e+00> : vector<8x128xf32>
    %80 = tpu.matmul %72, %9, %cst_50 {dimension_numbers = #tpu.dot_dimension_numbers<[1], [0], [0], [1], [0, 0, 1, 1], [], []>} : vector<8x128xf32>, vector<128x128xf32>, vector<8x128xf32> -> vector<8x128xf32>
    %81 = arith.addf %79, %80 : vector<8x128xf32>
    %cst_51 = arith.constant 0.000000e+00 : f32
    %82 = vector.broadcast %cst_51 : f32 to vector<8x128xf32>
    %83 = arith.maximumf %81, %82 : vector<8x128xf32>
    %84 = arith.index_cast %c6_i32 : i32 to index
    %c0_52 = arith.constant 0 : index
    %c0_53 = arith.constant 0 : index
    %85 = vector.load %arg12[%84, %c0_52, %c0_53] : memref<8x8x128xf32, #tpu.memory_space<vmem>>, vector<1x8x128xf32>
    %86 = vector.shape_cast %85 : vector<1x8x128xf32> to vector<8x128xf32>
    %87 = vector.shape_cast %83 : vector<8x128xf32> to vector<1x8x128xf32>
    tpu.vector_store %arg12[%84, %c0_52, %c0_53], %87 {strides = array<i32>} : memref<8x8x128xf32, #tpu.memory_space<vmem>>, vector<1x8x128xf32>,
    %c7_i32 = arith.constant 7 : i32
    %88 = arith.index_cast %c7_i32 : i32 to index
    %c0_54 = arith.constant 0 : index
    %c0_55 = arith.constant 0 : index
    %89 = vector.load %arg12[%88, %c0_54, %c0_55] : memref<8x8x128xf32, #tpu.memory_space<vmem>>, vector<1x8x128xf32>
    %90 = vector.shape_cast %89 : vector<1x8x128xf32> to vector<8x128xf32>
    %cst_56 = arith.constant dense<0.000000e+00> : vector<8x128xf32>
    %91 = tpu.matmul %83, %9, %cst_56 {dimension_numbers = #tpu.dot_dimension_numbers<[1], [0], [0], [1], [0, 0, 1, 1], [], []>} : vector<8x128xf32>, vector<128x128xf32>, vector<8x128xf32> -> vector<8x128xf32>
    %92 = arith.addf %90, %91 : vector<8x128xf32>
    %cst_57 = arith.constant 0.000000e+00 : f32
    %93 = vector.broadcast %cst_57 : f32 to vector<8x128xf32>
    %94 = arith.maximumf %92, %93 : vector<8x128xf32>
    %95 = arith.index_cast %c7_i32 : i32 to index
    %c0_58 = arith.constant 0 : index
    %c0_59 = arith.constant 0 : index
    %96 = vector.load %arg12[%95, %c0_58, %c0_59] : memref<8x8x128xf32, #tpu.memory_space<vmem>>, vector<1x8x128xf32>
    %97 = vector.shape_cast %96 : vector<1x8x128xf32> to vector<8x128xf32>
    %98 = vector.shape_cast %94 : vector<8x128xf32> to vector<1x8x128xf32>
    tpu.vector_store %arg12[%95, %c0_58, %c0_59], %98 {strides = array<i32>} : memref<8x8x128xf32, #tpu.memory_space<vmem>>, vector<1x8x128xf32>,
    %c8_i32 = arith.constant 8 : i32
    %c0_60 = arith.constant 0 : index
    %c0_61 = arith.constant 0 : index
    %c0_62 = arith.constant 0 : index
    %99 = vector.load %arg11[%c0_60, %c0_61, %c0_62] : memref<2x8x128xf32, #tpu.memory_space<vmem>>, vector<1x8x128xf32>
    %100 = vector.shape_cast %99 : vector<1x8x128xf32> to vector<8x128xf32>
    %101 = vector.shape_cast %94 : vector<8x128xf32> to vector<1x8x128xf32>
    tpu.vector_store %arg11[%c0_60, %c0_61, %c0_62], %101 {strides = array<i32>} : memref<2x8x128xf32, #tpu.memory_space<vmem>>, vector<1x8x128xf32>,
    %c0_63 = arith.constant 0 : index
    %c0_64 = arith.constant 0 : index
    %c0_65 = arith.constant 0 : index
    %102 = vector.load %arg12[%c0_63, %c0_64, %c0_65] : memref<8x8x128xf32, #tpu.memory_space<vmem>>, vector<8x8x128xf32>
    %103 = vector.shape_cast %102 : vector<8x8x128xf32> to vector<64x128xf32>
    %c0_66 = arith.constant 0 : index
    %c0_67 = arith.constant 0 : index
    %104 = vector.load %arg5[%c0_66, %c0_67] : memref<128x128xf32, #tpu.memory_space<vmem>>, vector<128x128xf32>
    %cst_68 = arith.constant dense<0.000000e+00> : vector<64x128xf32>
    %105 = tpu.matmul %103, %104, %cst_68 {dimension_numbers = #tpu.dot_dimension_numbers<[1], [0], [0], [1], [0, 0, 1, 1], [], []>} : vector<64x128xf32>, vector<128x128xf32>, vector<64x128xf32> -> vector<64x128xf32>
    %c0_69 = arith.constant 0 : index
    %c0_70 = arith.constant 0 : index
    %106 = vector.load %arg7[%c0_69, %c0_70] : memref<1x128xf32, #tpu.memory_space<vmem>>, vector<1x128xf32>
    %107 = vector.broadcast %106 : vector<1x128xf32> to vector<64x128xf32>
    %108 = arith.addf %105, %107 : vector<64x128xf32>
    %109 = vector.shape_cast %108 : vector<64x128xf32> to vector<8x8x128xf32>
    %c0_71 = arith.constant 0 : index
    %c0_72 = arith.constant 0 : index
    %c0_73 = arith.constant 0 : index
    %110 = vector.load %arg12[%c0_71, %c0_72, %c0_73] : memref<8x8x128xf32, #tpu.memory_space<vmem>>, vector<8x8x128xf32>
    tpu.vector_store %arg12[%c0_71, %c0_72, %c0_73], %109 {strides = array<i32>} : memref<8x8x128xf32, #tpu.memory_space<vmem>>, vector<8x8x128xf32>,
    %c0_74 = arith.constant 0 : index
    %c0_75 = arith.constant 0 : index
    %111 = vector.load %arg6[%c0_74, %c0_75] : memref<128x128xf32, #tpu.memory_space<vmem>>, vector<128x128xf32>
    %cst_76 = arith.constant 0.000000e+00 : f32
    %112 = vector.broadcast %cst_76 : f32 to vector<8x128xf32>
    %c0_i32_77 = arith.constant 0 : i32
    %113 = arith.index_cast %c0_i32_77 : i32 to index
    %c0_78 = arith.constant 0 : index
    %c0_79 = arith.constant 0 : index
    %114 = vector.load %arg12[%113, %c0_78, %c0_79] : memref<8x8x128xf32, #tpu.memory_space<vmem>>, vector<1x8x128xf32>
    %115 = vector.shape_cast %114 : vector<1x8x128xf32> to vector<8x128xf32>
    %cst_80 = arith.constant dense<0.000000e+00> : vector<8x128xf32>
    %116 = tpu.matmul %112, %111, %cst_80 {dimension_numbers = #tpu.dot_dimension_numbers<[1], [0], [0], [1], [0, 0, 1, 1], [], []>} : vector<8x128xf32>, vector<128x128xf32>, vector<8x128xf32> -> vector<8x128xf32>
    %117 = arith.addf %115, %116 : vector<8x128xf32>
    %cst_81 = arith.constant 0.000000e+00 : f32
    %118 = vector.broadcast %cst_81 : f32 to vector<8x128xf32>
    %119 = arith.maximumf %117, %118 : vector<8x128xf32>
    %120 = arith.index_cast %c0_i32_77 : i32 to index
    %c0_82 = arith.constant 0 : index
    %c0_83 = arith.constant 0 : index
    %121 = vector.load %arg12[%120, %c0_82, %c0_83] : memref<8x8x128xf32, #tpu.memory_space<vmem>>, vector<1x8x128xf32>
    %122 = vector.shape_cast %121 : vector<1x8x128xf32> to vector<8x128xf32>
    %123 = vector.shape_cast %119 : vector<8x128xf32> to vector<1x8x128xf32>
    tpu.vector_store %arg12[%120, %c0_82, %c0_83], %123 {strides = array<i32>} : memref<8x8x128xf32, #tpu.memory_space<vmem>>, vector<1x8x128xf32>,
    %c1_i32_84 = arith.constant 1 : i32
    %124 = arith.index_cast %c1_i32_84 : i32 to index
    %c0_85 = arith.constant 0 : index
    %c0_86 = arith.constant 0 : index
    %125 = vector.load %arg12[%124, %c0_85, %c0_86] : memref<8x8x128xf32, #tpu.memory_space<vmem>>, vector<1x8x128xf32>
    %126 = vector.shape_cast %125 : vector<1x8x128xf32> to vector<8x128xf32>
    %cst_87 = arith.constant dense<0.000000e+00> : vector<8x128xf32>
    %127 = tpu.matmul %119, %111, %cst_87 {dimension_numbers = #tpu.dot_dimension_numbers<[1], [0], [0], [1], [0, 0, 1, 1], [], []>} : vector<8x128xf32>, vector<128x128xf32>, vector<8x128xf32> -> vector<8x128xf32>
    %128 = arith.addf %126, %127 : vector<8x128xf32>
    %cst_88 = arith.constant 0.000000e+00 : f32
    %129 = vector.broadcast %cst_88 : f32 to vector<8x128xf32>
    %130 = arith.maximumf %128, %129 : vector<8x128xf32>
    %131 = arith.index_cast %c1_i32_84 : i32 to index
    %c0_89 = arith.constant 0 : index
    %c0_90 = arith.constant 0 : index
    %132 = vector.load %arg12[%131, %c0_89, %c0_90] : memref<8x8x128xf32, #tpu.memory_space<vmem>>, vector<1x8x128xf32>
    %133 = vector.shape_cast %132 : vector<1x8x128xf32> to vector<8x128xf32>
    %134 = vector.shape_cast %130 : vector<8x128xf32> to vector<1x8x128xf32>
    tpu.vector_store %arg12[%131, %c0_89, %c0_90], %134 {strides = array<i32>} : memref<8x8x128xf32, #tpu.memory_space<vmem>>, vector<1x8x128xf32>,
    %c2_i32_91 = arith.constant 2 : i32
    %135 = arith.index_cast %c2_i32_91 : i32 to index
    %c0_92 = arith.constant 0 : index
    %c0_93 = arith.constant 0 : index
    %136 = vector.load %arg12[%135, %c0_92, %c0_93] : memref<8x8x128xf32, #tpu.memory_space<vmem>>, vector<1x8x128xf32>
    %137 = vector.shape_cast %136 : vector<1x8x128xf32> to vector<8x128xf32>
    %cst_94 = arith.constant dense<0.000000e+00> : vector<8x128xf32>
    %138 = tpu.matmul %130, %111, %cst_94 {dimension_numbers = #tpu.dot_dimension_numbers<[1], [0], [0], [1], [0, 0, 1, 1], [], []>} : vector<8x128xf32>, vector<128x128xf32>, vector<8x128xf32> -> vector<8x128xf32>
    %139 = arith.addf %137, %138 : vector<8x128xf32>
    %cst_95 = arith.constant 0.000000e+00 : f32
    %140 = vector.broadcast %cst_95 : f32 to vector<8x128xf32>
    %141 = arith.maximumf %139, %140 : vector<8x128xf32>
    %142 = arith.index_cast %c2_i32_91 : i32 to index
    %c0_96 = arith.constant 0 : index
    %c0_97 = arith.constant 0 : index
    %143 = vector.load %arg12[%142, %c0_96, %c0_97] : memref<8x8x128xf32, #tpu.memory_space<vmem>>, vector<1x8x128xf32>
    %144 = vector.shape_cast %143 : vector<1x8x128xf32> to vector<8x128xf32>
    %145 = vector.shape_cast %141 : vector<8x128xf32> to vector<1x8x128xf32>
    tpu.vector_store %arg12[%142, %c0_96, %c0_97], %145 {strides = array<i32>} : memref<8x8x128xf32, #tpu.memory_space<vmem>>, vector<1x8x128xf32>,
    %c3_i32_98 = arith.constant 3 : i32
    %146 = arith.index_cast %c3_i32_98 : i32 to index
    %c0_99 = arith.constant 0 : index
    %c0_100 = arith.constant 0 : index
    %147 = vector.load %arg12[%146, %c0_99, %c0_100] : memref<8x8x128xf32, #tpu.memory_space<vmem>>, vector<1x8x128xf32>
    %148 = vector.shape_cast %147 : vector<1x8x128xf32> to vector<8x128xf32>
    %cst_101 = arith.constant dense<0.000000e+00> : vector<8x128xf32>
    %149 = tpu.matmul %141, %111, %cst_101 {dimension_numbers = #tpu.dot_dimension_numbers<[1], [0], [0], [1], [0, 0, 1, 1], [], []>} : vector<8x128xf32>, vector<128x128xf32>, vector<8x128xf32> -> vector<8x128xf32>
    %150 = arith.addf %148, %149 : vector<8x128xf32>
    %cst_102 = arith.constant 0.000000e+00 : f32
    %151 = vector.broadcast %cst_102 : f32 to vector<8x128xf32>
    %152 = arith.maximumf %150, %151 : vector<8x128xf32>
    %153 = arith.index_cast %c3_i32_98 : i32 to index
    %c0_103 = arith.constant 0 : index
    %c0_104 = arith.constant 0 : index
    %154 = vector.load %arg12[%153, %c0_103, %c0_104] : memref<8x8x128xf32, #tpu.memory_space<vmem>>, vector<1x8x128xf32>
    %155 = vector.shape_cast %154 : vector<1x8x128xf32> to vector<8x128xf32>
    %156 = vector.shape_cast %152 : vector<8x128xf32> to vector<1x8x128xf32>
    tpu.vector_store %arg12[%153, %c0_103, %c0_104], %156 {strides = array<i32>} : memref<8x8x128xf32, #tpu.memory_space<vmem>>, vector<1x8x128xf32>,
    %c4_i32_105 = arith.constant 4 : i32
    %157 = arith.index_cast %c4_i32_105 : i32 to index
    %c0_106 = arith.constant 0 : index
    %c0_107 = arith.constant 0 : index
    %158 = vector.load %arg12[%157, %c0_106, %c0_107] : memref<8x8x128xf32, #tpu.memory_space<vmem>>, vector<1x8x128xf32>
    %159 = vector.shape_cast %158 : vector<1x8x128xf32> to vector<8x128xf32>
    %cst_108 = arith.constant dense<0.000000e+00> : vector<8x128xf32>
    %160 = tpu.matmul %152, %111, %cst_108 {dimension_numbers = #tpu.dot_dimension_numbers<[1], [0], [0], [1], [0, 0, 1, 1], [], []>} : vector<8x128xf32>, vector<128x128xf32>, vector<8x128xf32> -> vector<8x128xf32>
    %161 = arith.addf %159, %160 : vector<8x128xf32>
    %cst_109 = arith.constant 0.000000e+00 : f32
    %162 = vector.broadcast %cst_109 : f32 to vector<8x128xf32>
    %163 = arith.maximumf %161, %162 : vector<8x128xf32>
    %164 = arith.index_cast %c4_i32_105 : i32 to index
    %c0_110 = arith.constant 0 : index
    %c0_111 = arith.constant 0 : index
    %165 = vector.load %arg12[%164, %c0_110, %c0_111] : memref<8x8x128xf32, #tpu.memory_space<vmem>>, vector<1x8x128xf32>
    %166 = vector.shape_cast %165 : vector<1x8x128xf32> to vector<8x128xf32>
    %167 = vector.shape_cast %163 : vector<8x128xf32> to vector<1x8x128xf32>
    tpu.vector_store %arg12[%164, %c0_110, %c0_111], %167 {strides = array<i32>} : memref<8x8x128xf32, #tpu.memory_space<vmem>>, vector<1x8x128xf32>,
    %c5_i32_112 = arith.constant 5 : i32
    %168 = arith.index_cast %c5_i32_112 : i32 to index
    %c0_113 = arith.constant 0 : index
    %c0_114 = arith.constant 0 : index
    %169 = vector.load %arg12[%168, %c0_113, %c0_114] : memref<8x8x128xf32, #tpu.memory_space<vmem>>, vector<1x8x128xf32>
    %170 = vector.shape_cast %169 : vector<1x8x128xf32> to vector<8x128xf32>
    %cst_115 = arith.constant dense<0.000000e+00> : vector<8x128xf32>
    %171 = tpu.matmul %163, %111, %cst_115 {dimension_numbers = #tpu.dot_dimension_numbers<[1], [0], [0], [1], [0, 0, 1, 1], [], []>} : vector<8x128xf32>, vector<128x128xf32>, vector<8x128xf32> -> vector<8x128xf32>
    %172 = arith.addf %170, %171 : vector<8x128xf32>
    %cst_116 = arith.constant 0.000000e+00 : f32
    %173 = vector.broadcast %cst_116 : f32 to vector<8x128xf32>
    %174 = arith.maximumf %172, %173 : vector<8x128xf32>
    %175 = arith.index_cast %c5_i32_112 : i32 to index
    %c0_117 = arith.constant 0 : index
    %c0_118 = arith.constant 0 : index
    %176 = vector.load %arg12[%175, %c0_117, %c0_118] : memref<8x8x128xf32, #tpu.memory_space<vmem>>, vector<1x8x128xf32>
    %177 = vector.shape_cast %176 : vector<1x8x128xf32> to vector<8x128xf32>
    %178 = vector.shape_cast %174 : vector<8x128xf32> to vector<1x8x128xf32>
    tpu.vector_store %arg12[%175, %c0_117, %c0_118], %178 {strides = array<i32>} : memref<8x8x128xf32, #tpu.memory_space<vmem>>, vector<1x8x128xf32>,
    %c6_i32_119 = arith.constant 6 : i32
    %179 = arith.index_cast %c6_i32_119 : i32 to index
    %c0_120 = arith.constant 0 : index
    %c0_121 = arith.constant 0 : index
    %180 = vector.load %arg12[%179, %c0_120, %c0_121] : memref<8x8x128xf32, #tpu.memory_space<vmem>>, vector<1x8x128xf32>
    %181 = vector.shape_cast %180 : vector<1x8x128xf32> to vector<8x128xf32>
    %cst_122 = arith.constant dense<0.000000e+00> : vector<8x128xf32>
    %182 = tpu.matmul %174, %111, %cst_122 {dimension_numbers = #tpu.dot_dimension_numbers<[1], [0], [0], [1], [0, 0, 1, 1], [], []>} : vector<8x128xf32>, vector<128x128xf32>, vector<8x128xf32> -> vector<8x128xf32>
    %183 = arith.addf %181, %182 : vector<8x128xf32>
    %cst_123 = arith.constant 0.000000e+00 : f32
    %184 = vector.broadcast %cst_123 : f32 to vector<8x128xf32>
    %185 = arith.maximumf %183, %184 : vector<8x128xf32>
    %186 = arith.index_cast %c6_i32_119 : i32 to index
    %c0_124 = arith.constant 0 : index
    %c0_125 = arith.constant 0 : index
    %187 = vector.load %arg12[%186, %c0_124, %c0_125] : memref<8x8x128xf32, #tpu.memory_space<vmem>>, vector<1x8x128xf32>
    %188 = vector.shape_cast %187 : vector<1x8x128xf32> to vector<8x128xf32>
    %189 = vector.shape_cast %185 : vector<8x128xf32> to vector<1x8x128xf32>
    tpu.vector_store %arg12[%186, %c0_124, %c0_125], %189 {strides = array<i32>} : memref<8x8x128xf32, #tpu.memory_space<vmem>>, vector<1x8x128xf32>,
    %c7_i32_126 = arith.constant 7 : i32
    %190 = arith.index_cast %c7_i32_126 : i32 to index
    %c0_127 = arith.constant 0 : index
    %c0_128 = arith.constant 0 : index
    %191 = vector.load %arg12[%190, %c0_127, %c0_128] : memref<8x8x128xf32, #tpu.memory_space<vmem>>, vector<1x8x128xf32>
    %192 = vector.shape_cast %191 : vector<1x8x128xf32> to vector<8x128xf32>
    %cst_129 = arith.constant dense<0.000000e+00> : vector<8x128xf32>
    %193 = tpu.matmul %185, %111, %cst_129 {dimension_numbers = #tpu.dot_dimension_numbers<[1], [0], [0], [1], [0, 0, 1, 1], [], []>} : vector<8x128xf32>, vector<128x128xf32>, vector<8x128xf32> -> vector<8x128xf32>
    %194 = arith.addf %192, %193 : vector<8x128xf32>
    %cst_130 = arith.constant 0.000000e+00 : f32
    %195 = vector.broadcast %cst_130 : f32 to vector<8x128xf32>
    %196 = arith.maximumf %194, %195 : vector<8x128xf32>
    %197 = arith.index_cast %c7_i32_126 : i32 to index
    %c0_131 = arith.constant 0 : index
    %c0_132 = arith.constant 0 : index
    %198 = vector.load %arg12[%197, %c0_131, %c0_132] : memref<8x8x128xf32, #tpu.memory_space<vmem>>, vector<1x8x128xf32>
    %199 = vector.shape_cast %198 : vector<1x8x128xf32> to vector<8x128xf32>
    %200 = vector.shape_cast %196 : vector<8x128xf32> to vector<1x8x128xf32>
    tpu.vector_store %arg12[%197, %c0_131, %c0_132], %200 {strides = array<i32>} : memref<8x8x128xf32, #tpu.memory_space<vmem>>, vector<1x8x128xf32>,
    %c8_i32_133 = arith.constant 8 : i32
    %c1 = arith.constant 1 : index
    %c0_134 = arith.constant 0 : index
    %c0_135 = arith.constant 0 : index
    %201 = vector.load %arg11[%c1, %c0_134, %c0_135] : memref<2x8x128xf32, #tpu.memory_space<vmem>>, vector<1x8x128xf32>
    %202 = vector.shape_cast %201 : vector<1x8x128xf32> to vector<8x128xf32>
    %203 = vector.shape_cast %196 : vector<8x128xf32> to vector<1x8x128xf32>
    tpu.vector_store %arg11[%c1, %c0_134, %c0_135], %203 {strides = array<i32>} : memref<2x8x128xf32, #tpu.memory_space<vmem>>, vector<1x8x128xf32>,
    %c0_136 = arith.constant 0 : index
    %c0_137 = arith.constant 0 : index
    %c0_138 = arith.constant 0 : index
    %204 = vector.load %arg12[%c0_136, %c0_137, %c0_138] : memref<8x8x128xf32, #tpu.memory_space<vmem>>, vector<8x8x128xf32>
    %205 = vector.shape_cast %204 : vector<8x8x128xf32> to vector<64x128xf32>
    %c0_139 = arith.constant 0 : index
    %c0_140 = arith.constant 0 : index
    %206 = vector.load %arg8[%c0_139, %c0_140] : memref<128x128xf32, #tpu.memory_space<vmem>>, vector<128x128xf32>
    %cst_141 = arith.constant dense<0.000000e+00> : vector<64x128xf32>
    %207 = tpu.matmul %205, %206, %cst_141 {dimension_numbers = #tpu.dot_dimension_numbers<[1], [0], [0], [1], [0, 0, 1, 1], [], []>} : vector<64x128xf32>, vector<128x128xf32>, vector<64x128xf32> -> vector<64x128xf32>
    %c0_142 = arith.constant 0 : index
    %c0_143 = arith.constant 0 : index
    %208 = vector.load %arg9[%c0_142, %c0_143] : memref<1x128xf32, #tpu.memory_space<vmem>>, vector<1x128xf32>
    %209 = vector.broadcast %208 : vector<1x128xf32> to vector<64x128xf32>
    %210 = arith.addf %207, %209 : vector<64x128xf32>
    %211 = vector.shape_cast %210 : vector<64x128xf32> to vector<8x8x128xf32>
    %c0_144 = arith.constant 0 : index
    %c0_145 = arith.constant 0 : index
    %c0_146 = arith.constant 0 : index
    %212 = vector.load %arg10[%c0_144, %c0_145, %c0_146] : memref<8x8x128xf32, #tpu.memory_space<vmem>>, vector<8x8x128xf32>
    tpu.vector_store %arg10[%c0_144, %c0_145, %c0_146], %211 {strides = array<i32>} : memref<8x8x128xf32, #tpu.memory_space<vmem>>, vector<8x8x128xf32>,
    return
  }
  func.func @transform_0(%arg0: i32) -> (i32, i32, i32) {
    %c0_i32 = arith.constant 0 : i32
    %c0_i32_0 = arith.constant 0 : i32
    %c0_i32_1 = arith.constant 0 : i32
    return %c0_i32, %arg0, %c0_i32_0 : i32, i32, i32
  }
  func.func @transform_1(%arg0: i32) -> (i32, i32) {
    %c0_i32 = arith.constant 0 : i32
    %c0_i32_0 = arith.constant 0 : i32
    %c0_i32_1 = arith.constant 0 : i32
    return %c0_i32, %c0_i32_0 : i32, i32
  }
  func.func @transform_2(%arg0: i32) -> (i32, i32) {
    %c0_i32 = arith.constant 0 : i32
    %c0_i32_0 = arith.constant 0 : i32
    %c0_i32_1 = arith.constant 0 : i32
    return %c0_i32, %c0_i32_0 : i32, i32
  }
  func.func @transform_3(%arg0: i32) -> (i32, i32) {
    %c0_i32 = arith.constant 0 : i32
    %c0_i32_0 = arith.constant 0 : i32
    %c0_i32_1 = arith.constant 0 : i32
    return %c0_i32, %c0_i32_0 : i32, i32
  }
  func.func @transform_4(%arg0: i32) -> (i32, i32) {
    %c0_i32 = arith.constant 0 : i32
    %c0_i32_0 = arith.constant 0 : i32
    %c0_i32_1 = arith.constant 0 : i32
    return %c0_i32, %c0_i32_0 : i32, i32
  }
  func.func @transform_5(%arg0: i32) -> (i32, i32) {
    %c0_i32 = arith.constant 0 : i32
    %c0_i32_0 = arith.constant 0 : i32
    %c0_i32_1 = arith.constant 0 : i32
    return %c0_i32, %c0_i32_0 : i32, i32
  }
  func.func @transform_6(%arg0: i32) -> (i32, i32) {
    %c0_i32 = arith.constant 0 : i32
    %c0_i32_0 = arith.constant 0 : i32
    %c0_i32_1 = arith.constant 0 : i32
    return %c0_i32, %c0_i32_0 : i32, i32
  }
  func.func @transform_7(%arg0: i32) -> (i32, i32) {
    %c0_i32 = arith.constant 0 : i32
    %c0_i32_0 = arith.constant 0 : i32
    %c0_i32_1 = arith.constant 0 : i32
    return %c0_i32, %c0_i32_0 : i32, i32
  }
  func.func @transform_8(%arg0: i32) -> (i32, i32) {
    %c0_i32 = arith.constant 0 : i32
    %c0_i32_0 = arith.constant 0 : i32
    %c0_i32_1 = arith.constant 0 : i32
    return %c0_i32, %c0_i32_0 : i32, i32
  }
  func.func @transform_9(%arg0: i32) -> (i32, i32, i32) {
    %c0_i32 = arith.constant 0 : i32
    %c0_i32_0 = arith.constant 0 : i32
    %c0_i32_1 = arith.constant 0 : i32
    return %c0_i32, %arg0, %c0_i32_0 : i32, i32, i32
  }
  func.func @transform_10(%arg0: i32) -> (i32, i32, i32) {
    %c0_i32 = arith.constant 0 : i32
    %c0_i32_0 = arith.constant 0 : i32
    %c0_i32_1 = arith.constant 0 : i32
    return %c0_i32, %arg0, %c0_i32_0 : i32, i32, i32
  }
}

</mosaic_0001>

<llo_original>
// kernel: tpu_custom_call.1
$region0: #{tpu_custom_call.1}
  #allocation0 [shape = 'u32[]', space=smem, size = 0x4, offset = 0x4, fixed_abs, tag = 'smem constant byte address 0x4 - core index']
  #allocation1 [shape = 'u32[144,128]{1,0:T(1,128)}', space=vmem, size = 0x12000, scoped, tag = 'internal scratch']
  #allocation2 [shape = 'f32[8,8,128]{2,1,0:T(8,128)}', space=vmem, size = 0x8000, scoped, tag = 'scratch operand']
  %s0 = inlined_call_operand.hbm [shape: f32[8,8,128], index: 0, kind: input, shape index: {}]
  %s1 = inlined_call_operand.hbm [shape: f32[128,128], index: 1, kind: input, shape index: {}]
  %s2 = inlined_call_operand.hbm [shape: f32[128,128], index: 2, kind: input, shape index: {}]
  %s3 = inlined_call_operand.vmem [shape: f32[1,128], index: 3, kind: input, shape index: {}]
  %s4 = inlined_call_operand.hbm [shape: f32[128,128], index: 4, kind: input, shape index: {}]
  %s5 = inlined_call_operand.hbm [shape: f32[128,128], index: 5, kind: input, shape index: {}]
  %s6 = inlined_call_operand.vmem [shape: f32[1,128], index: 6, kind: input, shape index: {}]
  %s7 = inlined_call_operand.hbm [shape: f32[128,128], index: 7, kind: input, shape index: {}]
  %s8 = inlined_call_operand.vmem [shape: f32[1,128], index: 8, kind: input, shape index: {}]
  %s9 = inlined_call_operand.hbm [shape: f32[8,8,128], index: 9, kind: output, shape index: {0}]
  %s10 = inlined_call_operand.hbm [shape: f32[2,8,128], index: 10, kind: output, shape index: {1}]
  %11 = xla_tuple %s9, %s10
  %s12 = sld [smem:[#allocation0]]
  $region78: #{tpu_custom_call.1} parent=0
    _
  %s14 = ssub.s32 1, %s12
  %s15 = scalar_select 0, %s14, %s12
  $region1: #{tpu_custom_call.1} parent=0
    #allocation3 [shape = 'u8[32768]{0}', space=vmem, size = 0x8000, scoped, tag = 'input window, operand 0, single buffered']
    #allocation4 [shape = 's32[1]{0}', space=sflag, size = 0x4, scoped, tag = 'scoped memory for tpu_custom_call.1']
    #allocation5 [shape = 's32[1]{0}', space=sflag, size = 0x4, scoped, tag = 'scoped memory for tpu_custom_call.1']
    #allocation6 [shape = 'u8[65536]{0}', space=vmem, size = 0x10000, scoped, tag = 'input window, operand 1, single buffered']
    #allocation7 [shape = 's32[1]{0}', space=sflag, size = 0x4, scoped, tag = 'scoped memory for tpu_custom_call.1']
    #allocation8 [shape = 'u8[65536]{0}', space=vmem, size = 0x10000, scoped, tag = 'input window, operand 2, single buffered']
    #allocation9 [shape = 'u8[65536]{0}', space=vmem, size = 0x10000, scoped, tag = 'input window, operand 4, single buffered']
    #allocation10 [shape = 's32[1]{0}', space=sflag, size = 0x4, scoped, tag = 'scoped memory for tpu_custom_call.1']
    #allocation11 [shape = 'u8[65536]{0}', space=vmem, size = 0x10000, scoped, tag = 'input window, operand 5, single buffered']
    #allocation12 [shape = 'u8[65536]{0}', space=vmem, size = 0x10000, scoped, tag = 'input window, operand 7, single buffered']
    #allocation13 [shape = 's32[1]{0}', space=sflag, size = 0x4, scoped, tag = 'scoped memory for tpu_custom_call.1']
    #allocation14 [shape = 'u8[32768]{0}', space=vmem, size = 0x8000, scoped, tag = 'output window, operand 0, single buffered']
    #allocation15 [shape = 'u8[8192]{0}', space=vmem, size = 0x2000, scoped, tag = 'output window, operand 1, single buffered']
    #allocation16 [shape = 's32[1]{0}', space=sflag, size = 0x4, scoped, tag = 'scoped memory for tpu_custom_call.1']
    %16 = vsyncpa [#allocation4], 0
    %17 = vsyncpa [#allocation7], 0
    %18 = vsyncpa [#allocation10], 0
    %19 = vsyncpa [#allocation13], 0
    %20 = vsyncpa [#allocation5], 0
    %21 = vsyncpa [#allocation16], 0
    // Predicated region
    $region2: #{tpu_custom_call.1} parent=1 // pred_check
      _
    $region3: #{tpu_custom_call.1} parent=1 // pred_check_branch
      %23 = sbr.rel (0) target = $region5
    $region4: #{tpu_custom_call.1} parent=1 // pred_region
      %s25 = ssub.s32 1024, 1024
      %26 = vsyncadd [#allocation4], %s25
      %s27 = sshll.u32 [#allocation3], 4
      %s28 = int_to_ptr.vmem [resolvable:$true] %s27
      %33 = dma.hbm_to_vmem [thread:$0]  %s0, 1024, %s28, [#allocation4], 128, 128, 8
    $region5: #{tpu_custom_call.1} parent=1 // pred_fallthru
      _
    // Predicated region
    $region6: #{tpu_custom_call.1} parent=1 // pred_check
      _
    $region7: #{tpu_custom_call.1} parent=1 // pred_check_branch
      %35 = sbr.rel (0) target = $region9
    $region8: #{tpu_custom_call.1} parent=1 // pred_region
      %s37 = ssub.s32 2048, 2048
      %38 = vsyncadd [#allocation7], %s37
      %s39 = sshll.u32 [#allocation6], 4
      %s40 = int_to_ptr.vmem [resolvable:$true] %s39
      %45 = dma.hbm_to_vmem [thread:$0]  %s1, 2048, %s40, [#allocation7], 128, 128, 8
    $region9: #{tpu_custom_call.1} parent=1 // pred_fallthru
      _
    // Predicated region
    $region10: #{tpu_custom_call.1} parent=1 // pred_check
      _
    $region11: #{tpu_custom_call.1} parent=1 // pred_check_branch
      %47 = sbr.rel (0) target = $region13
    $region12: #{tpu_custom_call.1} parent=1 // pred_region
      %s49 = ssub.s32 2048, 2048
      %50 = vsyncadd [#allocation7], %s49
      %s51 = sshll.u32 [#allocation8], 4
      %s52 = int_to_ptr.vmem [resolvable:$true] %s51
      %57 = dma.hbm_to_vmem [thread:$0]  %s2, 2048, %s52, [#allocation7], 128, 128, 8
    $region13: #{tpu_custom_call.1} parent=1 // pred_fallthru
      _
    // Predicated region
    $region14: #{tpu_custom_call.1} parent=1 // pred_check
      _
    $region15: #{tpu_custom_call.1} parent=1 // pred_check_branch
      %59 = sbr.rel (0) target = $region17
    $region16: #{tpu_custom_call.1} parent=1 // pred_region
      _
    $region17: #{tpu_custom_call.1} parent=1 // pred_fallthru
      _
    // Predicated region
    $region18: #{tpu_custom_call.1} parent=1 // pred_check
      _
    $region19: #{tpu_custom_call.1} parent=1 // pred_check_branch
      %61 = sbr.rel (0) target = $region21
    $region20: #{tpu_custom_call.1} parent=1 // pred_region
      %s63 = ssub.s32 2048, 2048
      %64 = vsyncadd [#allocation10], %s63
      %s65 = sshll.u32 [#allocation9], 4
      %s66 = int_to_ptr.vmem [resolvable:$true] %s65
      %71 = dma.hbm_to_vmem [thread:$0]  %s4, 2048, %s66, [#allocation10], 128, 128, 8
    $region21: #{tpu_custom_call.1} parent=1 // pred_fallthru
      _
    // Predicated region
    $region22: #{tpu_custom_call.1} parent=1 // pred_check
      _
    $region23: #{tpu_custom_call.1} parent=1 // pred_check_branch
      %73 = sbr.rel (0) target = $region25
    $region24: #{tpu_custom_call.1} parent=1 // pred_region
      %s75 = ssub.s32 2048, 2048
      %76 = vsyncadd [#allocation10], %s75
      %s77 = sshll.u32 [#allocation11], 4
      %s78 = int_to_ptr.vmem [resolvable:$true] %s77
      %83 = dma.hbm_to_vmem [thread:$0]  %s5, 2048, %s78, [#allocation10], 128, 128, 8
    $region25: #{tpu_custom_call.1} parent=1 // pred_fallthru
      _
    // Predicated region
    $region26: #{tpu_custom_call.1} parent=1 // pred_check
      _
    $region27: #{tpu_custom_call.1} parent=1 // pred_check_branch
      %85 = sbr.rel (0) target = $region29
    $region28: #{tpu_custom_call.1} parent=1 // pred_region
      _
    $region29: #{tpu_custom_call.1} parent=1 // pred_fallthru
      _
    // Predicated region
    $region30: #{tpu_custom_call.1} parent=1 // pred_check
      _
    $region31: #{tpu_custom_call.1} parent=1 // pred_check_branch
      %87 = sbr.rel (0) target = $region33
    $region32: #{tpu_custom_call.1} parent=1 // pred_region
      %s89 = ssub.s32 2048, 2048
      %90 = vsyncadd [#allocation13], %s89
      %s91 = sshll.u32 [#allocation12], 4
      %s92 = int_to_ptr.vmem [resolvable:$true] %s91
      %97 = dma.hbm_to_vmem [thread:$0]  %s7, 2048, %s92, [#allocation13], 128, 128, 8
    $region33: #{tpu_custom_call.1} parent=1 // pred_fallthru
      _
    // Predicated region
    $region34: #{tpu_custom_call.1} parent=1 // pred_check
      _
    $region35: #{tpu_custom_call.1} parent=1 // pred_check_branch
      %99 = sbr.rel (0) target = $region37
    $region36: #{tpu_custom_call.1} parent=1 // pred_region
      _
    $region37: #{tpu_custom_call.1} parent=1 // pred_fallthru
      _
    // Predicated region
    $region38: #{tpu_custom_call.1} parent=1 // pred_check
      _
    $region39: #{tpu_custom_call.1} parent=1 // pred_check_branch
      %101 = sbr.rel (0) target = $region41
    $region40: #{tpu_custom_call.1} parent=1 // pred_region
      %102 = dma.done [#allocation4], 1024
    $region41: #{tpu_custom_call.1} parent=1 // pred_fallthru
      _
    // Predicated region
    $region42: #{tpu_custom_call.1} parent=1 // pred_check
      _
    $region43: #{tpu_custom_call.1} parent=1 // pred_check_branch
      %104 = sbr.rel (0) target = $region45
    $region44: #{tpu_custom_call.1} parent=1 // pred_region
      %105 = dma.done [#allocation7], 2048
    $region45: #{tpu_custom_call.1} parent=1 // pred_fallthru
      _
    // Predicated region
    $region46: #{tpu_custom_call.1} parent=1 // pred_check
      _
    $region47: #{tpu_custom_call.1} parent=1 // pred_check_branch
      %107 = sbr.rel (0) target = $region49
    $region48: #{tpu_custom_call.1} parent=1 // pred_region
      %108 = dma.done [#allocation7], 2048
    $region49: #{tpu_custom_call.1} parent=1 // pred_fallthru
      _
    // Predicated region
    $region50: #{tpu_custom_call.1} parent=1 // pred_check
      _
    $region51: #{tpu_custom_call.1} parent=1 // pred_check_branch
      %110 = sbr.rel (0) target = $region53
    $region52: #{tpu_custom_call.1} parent=1 // pred_region
      %111 = dma.done [#allocation10], 2048
    $region53: #{tpu_custom_call.1} parent=1 // pred_fallthru
      _
    // Predicated region
    $region54: #{tpu_custom_call.1} parent=1 // pred_check
      _
    $region55: #{tpu_custom_call.1} parent=1 // pred_check_branch
      %113 = sbr.rel (0) target = $region57
    $region56: #{tpu_custom_call.1} parent=1 // pred_region
      %114 = dma.done [#allocation10], 2048
    $region57: #{tpu_custom_call.1} parent=1 // pred_fallthru
      _
    // Predicated region
    $region58: #{tpu_custom_call.1} parent=1 // pred_check
      _
    $region59: #{tpu_custom_call.1} parent=1 // pred_check_branch
      %116 = sbr.rel (0) target = $region61
    $region60: #{tpu_custom_call.1} parent=1 // pred_region
      %117 = dma.done [#allocation13], 2048
    $region61: #{tpu_custom_call.1} parent=1 // pred_fallthru
      _
    %v118 = vld [vmem:[#allocation3] sm:$0xff]
    %v119 = vld [vmem:[#allocation3 + $0x8] sm:$0xff]
    %v120 = vld [vmem:[#allocation3 + $0x10] sm:$0xff]
    %v121 = vld [vmem:[#allocation3 + $0x18] sm:$0xff]
    %v122 = vld [vmem:[#allocation3 + $0x20] sm:$0xff]
    %v123 = vld [vmem:[#allocation3 + $0x28] sm:$0xff]
    %v124 = vld [vmem:[#allocation3 + $0x30] sm:$0xff]
    %v125 = vld [vmem:[#allocation3 + $0x38] sm:$0xff]
    %v126 = vld [vmem:[#allocation6] sm:$0xff]
    %v127 = vld [vmem:[#allocation6 + $0x8] sm:$0xff]
    %v128 = vld [vmem:[#allocation6 + $0x10] sm:$0xff]
    %v129 = vld [vmem:[#allocation6 + $0x18] sm:$0xff]
    %v130 = vld [vmem:[#allocation6 + $0x20] sm:$0xff]
    %v131 = vld [vmem:[#allocation6 + $0x28] sm:$0xff]
    %v132 = vld [vmem:[#allocation6 + $0x30] sm:$0xff]
    %v133 = vld [vmem:[#allocation6 + $0x38] sm:$0xff]
    %v134 = vld [vmem:[#allocation6 + $0x40] sm:$0xff]
    %v135 = vld [vmem:[#allocation6 + $0x48] sm:$0xff]
    %v136 = vld [vmem:[#allocation6 + $0x50] sm:$0xff]
    %v137 = vld [vmem:[#allocation6 + $0x58] sm:$0xff]
    %v138 = vld [vmem:[#allocation6 + $0x60] sm:$0xff]
    %v139 = vld [vmem:[#allocation6 + $0x68] sm:$0xff]
    %v140 = vld [vmem:[#allocation6 + $0x70] sm:$0xff]
    %v141 = vld [vmem:[#allocation6 + $0x78] sm:$0xff]
    %v142 = vld [vmem:[%s3] sm:$0x1]
    %v144 = vlaneseq
    %v145 = vshrl.u32 %v144, 7
    %v146 = vsub.s32 0, %v145
    %v147 = vrot.slane %v142, %v146
    %149 = vmatprep.subr.mxu0 0.0
    %150 = vmatpush1.msra.mxu0 %v126
    %151 = vmatprep.subr.mxu0 0.0
    %152 = vmatpush1.msra.mxu0 %v127
    %153 = vmatprep.subr.mxu0 0.0
    %154 = vmatpush1.msra.mxu0 %v128
    %155 = vmatprep.subr.mxu0 0.0
    %156 = vmatpush1.msra.mxu0 %v129
    %157 = vmatprep.subr.mxu0 0.0
    %158 = vmatpush1.msra.mxu0 %v130
    %159 = vmatprep.subr.mxu0 0.0
    %160 = vmatpush1.msra.mxu0 %v131
    %161 = vmatprep.subr.mxu0 0.0
    %162 = vmatpush1.msra.mxu0 %v132
    %163 = vmatprep.subr.mxu0 0.0
    %164 = vmatpush1.msra.mxu0 %v133
    %165 = vmatprep.subr.mxu0 0.0
    %166 = vmatpush1.msra.mxu0 %v134
    %167 = vmatprep.subr.mxu0 0.0
    %168 = vmatpush1.msra.mxu0 %v135
    %169 = vmatprep.subr.mxu0 0.0
    %170 = vmatpush1.msra.mxu0 %v136
    %171 = vmatprep.subr.mxu0 0.0
    %172 = vmatpush1.msra.mxu0 %v137
    %173 = vmatprep.subr.mxu0 0.0
    %174 = vmatpush1.msra.mxu0 %v138
    %175 = vmatprep.subr.mxu0 0.0
    %176 = vmatpush1.msra.mxu0 %v139
    %177 = vmatprep.subr.mxu0 0.0
    %178 = vmatpush1.msra.mxu0 %v140
    %179 = vmatprep.subr.mxu0 0.0
    %180 = vmatpush1.msra.mxu0 %v141
    %181 = vmatprep.subr.mxu0 0.0
    %182 = vmatpush1.msra.mxu0 0.0
    %183 = vmatprep.subr.mxu0 0.0
    %184 = vmatpush1.msra.mxu0 0.0
    %185 = vmatprep.subr.mxu0 0.0
    %186 = vmatpush1.msra.mxu0 0.0
    %187 = vmatprep.subr.mxu0 0.0
    %188 = vmatpush1.msra.mxu0 0.0
    %189 = vmatprep.subr.mxu0 0.0
    %190 = vmatpush1.msra.mxu0 0.0
    %191 = vmatprep.subr.mxu0 0.0
    %192 = vmatpush1.msra.mxu0 0.0
    %193 = vmatprep.subr.mxu0 0.0
    %194 = vmatpush1.msra.mxu0 0.0
    %195 = vmatprep.subr.mxu0 0.0
    %196 = vmatpush1.msra.mxu0 0.0
    %197 = vmatprep.subr.mxu0 0.0
    %198 = vmatpush1.msra.mxu0 0.0
    %199 = vmatprep.subr.mxu0 0.0
    %200 = vmatpush1.msra.mxu0 0.0
    %201 = vmatprep.subr.mxu0 0.0
    %202 = vmatpush1.msra.mxu0 0.0
    %203 = vmatprep.subr.mxu0 0.0
    %204 = vmatpush1.msra.mxu0 0.0
    %205 = vmatprep.subr.mxu0 0.0
    %206 = vmatpush1.msra.mxu0 0.0
    %207 = vmatprep.subr.mxu0 0.0
    %208 = vmatpush1.msra.mxu0 0.0
    %209 = vmatprep.subr.mxu0 0.0
    %210 = vmatpush1.msra.mxu0 0.0
    %211 = vmatprep.subr.mxu0 0.0
    %212 = vmatpush1.msra.mxu0 0.0
    %213 = vmatprep.mubr.f32.mxu0 0.0
    %214 = vmatmul.mubr.f32.gmra.mrb[0].mxu0 %v118
    %v215 = vpop.f32.mrb[0].mxu0
    %v216 = vadd.f32 %v147, %v215
    %v217 = vpop.f32.mrb[0].mxu0
    %218 = vmatprep.mubr.f32.mxu0 0.0
    %219 = vmatmul.mubr.f32.gmra.mrb[0].mxu0 %v119
    %v220 = vpop.f32.mrb[0].mxu0
    %v221 = vadd.f32 %v147, %v220
    %v222 = vpop.f32.mrb[0].mxu0
    %223 = vmatprep.mubr.f32.mxu0 0.0
    %224 = vmatmul.mubr.f32.gmra.mrb[0].mxu0 %v120
    %v225 = vpop.f32.mrb[0].mxu0
    %v226 = vadd.f32 %v147, %v225
    %v227 = vpop.f32.mrb[0].mxu0
    %228 = vmatprep.mubr.f32.mxu0 0.0
    %229 = vmatmul.mubr.f32.gmra.mrb[0].mxu0 %v121
    %v230 = vpop.f32.mrb[0].mxu0
    %v231 = vadd.f32 %v147, %v230
    %v232 = vpop.f32.mrb[0].mxu0
    %233 = vmatprep.mubr.f32.mxu0 0.0
    %234 = vmatmul.mubr.f32.gmra.mrb[0].mxu0 %v122
    %v235 = vpop.f32.mrb[0].mxu0
    %v236 = vadd.f32 %v147, %v235
    %v237 = vpop.f32.mrb[0].mxu0
    %238 = vmatprep.mubr.f32.mxu0 0.0
    %239 = vmatmul.mubr.f32.gmra.mrb[0].mxu0 %v123
    %v240 = vpop.f32.mrb[0].mxu0
    %v241 = vadd.f32 %v147, %v240
    %v242 = vpop.f32.mrb[0].mxu0
    %243 = vmatprep.mubr.f32.mxu0 0.0
    %244 = vmatmul.mubr.f32.gmra.mrb[0].mxu0 %v124
    %v245 = vpop.f32.mrb[0].mxu0
    %v246 = vadd.f32 %v147, %v245
    %v247 = vpop.f32.mrb[0].mxu0
    %248 = vmatprep.mubr.f32.mxu0 0.0
    %249 = vmatmul.mubr.f32.gmra.mrb[0].mxu0 %v125
    %v250 = vpop.f32.mrb[0].mxu0
    %v251 = vadd.f32 %v147, %v250
    %v252 = vpop.f32.mrb[0].mxu0
    %253 = vdwg.mxu0
    %254 = vst [vmem:[#allocation2] sm:$0xff] %v216
    %255 = vst [vmem:[#allocation2 + $0x8] sm:$0xff] %v221
    %256 = vst [vmem:[#allocation2 + $0x10] sm:$0xff] %v226
    %257 = vst [vmem:[#allocation2 + $0x18] sm:$0xff] %v231
    %258 = vst [vmem:[#allocation2 + $0x20] sm:$0xff] %v236
    %259 = vst [vmem:[#allocation2 + $0x28] sm:$0xff] %v241
    %260 = vst [vmem:[#allocation2 + $0x30] sm:$0xff] %v246
    %261 = vst [vmem:[#allocation2 + $0x38] sm:$0xff] %v251
    %v262 = vld [vmem:[#allocation8] sm:$0xff]
    %v263 = vld [vmem:[#allocation8 + $0x8] sm:$0xff]
    %v264 = vld [vmem:[#allocation8 + $0x10] sm:$0xff]
    %v265 = vld [vmem:[#allocation8 + $0x18] sm:$0xff]
    %v266 = vld [vmem:[#allocation8 + $0x20] sm:$0xff]
    %v267 = vld [vmem:[#allocation8 + $0x28] sm:$0xff]
    %v268 = vld [vmem:[#allocation8 + $0x30] sm:$0xff]
    %v269 = vld [vmem:[#allocation8 + $0x38] sm:$0xff]
    %v270 = vld [vmem:[#allocation8 + $0x40] sm:$0xff]
    %v271 = vld [vmem:[#allocation8 + $0x48] sm:$0xff]
    %v272 = vld [vmem:[#allocation8 + $0x50] sm:$0xff]
    %v273 = vld [vmem:[#allocation8 + $0x58] sm:$0xff]
    %v274 = vld [vmem:[#allocation8 + $0x60] sm:$0xff]
    %v275 = vld [vmem:[#allocation8 + $0x68] sm:$0xff]
    %v276 = vld [vmem:[#allocation8 + $0x70] sm:$0xff]
    %v277 = vld [vmem:[#allocation8 + $0x78] sm:$0xff]
    %v278 = vld [vmem:[#allocation2] sm:$0xff]
    %279 = vmatprep.subr.mxu0 0.0
    %280 = vmatpush1.msra.mxu0 %v262
    %281 = vmatprep.subr.mxu0 0.0
    %282 = vmatpush1.msra.mxu0 %v263
    %283 = vmatprep.subr.mxu0 0.0
    %284 = vmatpush1.msra.mxu0 %v264
    %285 = vmatprep.subr.mxu0 0.0
    %286 = vmatpush1.msra.mxu0 %v265
    %287 = vmatprep.subr.mxu0 0.0
    %288 = vmatpush1.msra.mxu0 %v266
    %289 = vmatprep.subr.mxu0 0.0
    %290 = vmatpush1.msra.mxu0 %v267
    %291 = vmatprep.subr.mxu0 0.0
    %292 = vmatpush1.msra.mxu0 %v268
    %293 = vmatprep.subr.mxu0 0.0
    %294 = vmatpush1.msra.mxu0 %v269
    %295 = vmatprep.subr.mxu0 0.0
    %296 = vmatpush1.msra.mxu0 %v270
    %297 = vmatprep.subr.mxu0 0.0
    %298 = vmatpush1.msra.mxu0 %v271
    %299 = vmatprep.subr.mxu0 0.0
    %300 = vmatpush1.msra.mxu0 %v272
    %301 = vmatprep.subr.mxu0 0.0
    %302 = vmatpush1.msra.mxu0 %v273
    %303 = vmatprep.subr.mxu0 0.0
    %304 = vmatpush1.msra.mxu0 %v274
    %305 = vmatprep.subr.mxu0 0.0
    %306 = vmatpush1.msra.mxu0 %v275
    %307 = vmatprep.subr.mxu0 0.0
    %308 = vmatpush1.msra.mxu0 %v276
    %309 = vmatprep.subr.mxu0 0.0
    %310 = vmatpush1.msra.mxu0 %v277
    %311 = vmatprep.subr.mxu0 0.0
    %312 = vmatpush1.msra.mxu0 0.0
    %313 = vmatprep.subr.mxu0 0.0
    %314 = vmatpush1.msra.mxu0 0.0
    %315 = vmatprep.subr.mxu0 0.0
    %316 = vmatpush1.msra.mxu0 0.0
    %317 = vmatprep.subr.mxu0 0.0
    %318 = vmatpush1.msra.mxu0 0.0
    %319 = vmatprep.subr.mxu0 0.0
    %320 = vmatpush1.msra.mxu0 0.0
    %321 = vmatprep.subr.mxu0 0.0
    %322 = vmatpush1.msra.mxu0 0.0
    %323 = vmatprep.subr.mxu0 0.0
    %324 = vmatpush1.msra.mxu0 0.0
    %325 = vmatprep.subr.mxu0 0.0
    %326 = vmatpush1.msra.mxu0 0.0
    %327 = vmatprep.subr.mxu0 0.0
    %328 = vmatpush1.msra.mxu0 0.0
    %329 = vmatprep.subr.mxu0 0.0
    %330 = vmatpush1.msra.mxu0 0.0
    %331 = vmatprep.subr.mxu0 0.0
    %332 = vmatpush1.msra.mxu0 0.0
    %333 = vmatprep.subr.mxu0 0.0
    %334 = vmatpush1.msra.mxu0 0.0
    %335 = vmatprep.subr.mxu0 0.0
    %336 = vmatpush1.msra.mxu0 0.0
    %337 = vmatprep.subr.mxu0 0.0
    %338 = vmatpush1.msra.mxu0 0.0
    %339 = vmatprep.subr.mxu0 0.0
    %340 = vmatpush1.msra.mxu0 0.0
    %341 = vmatprep.subr.mxu0 0.0
    %342 = vmatpush1.msra.mxu0 0.0
    %343 = vmatprep.mubr.f32.mxu0 0.0
    %344 = vmatmul.mubr.f32.gmra.mrb[0].mxu0 0.0
    %v345 = vpop.f32.mrb[0].mxu0
    %v346 = vadd.f32 0.0, %v345
    %v347 = vpop.f32.mrb[0].mxu0
    %348 = vdwg.mxu0
    %v349 = vadd.f32 %v278, %v346
    %v350 = vmax.f32 %v349, 0.0
    %351 = vst [vmem:[#allocation2] sm:$0xff] %v350
    %s352 = scalar_lea.vmem [#allocation2], 8
    %v353 = vld [vmem:[%s352] sm:$0xff]
    %354 = vmatprep.subr.mxu0 0.0
    %355 = vmatpush1.msra.mxu0 %v262
    %356 = vmatprep.subr.mxu0 0.0
    %357 = vmatpush1.msra.mxu0 %v263
    %358 = vmatprep.subr.mxu0 0.0
    %359 = vmatpush1.msra.mxu0 %v264
    %360 = vmatprep.subr.mxu0 0.0
    %361 = vmatpush1.msra.mxu0 %v265
    %362 = vmatprep.subr.mxu0 0.0
    %363 = vmatpush1.msra.mxu0 %v266
    %364 = vmatprep.subr.mxu0 0.0
    %365 = vmatpush1.msra.mxu0 %v267
    %366 = vmatprep.subr.mxu0 0.0
    %367 = vmatpush1.msra.mxu0 %v268
    %368 = vmatprep.subr.mxu0 0.0
    %369 = vmatpush1.msra.mxu0 %v269
    %370 = vmatprep.subr.mxu0 0.0
    %371 = vmatpush1.msra.mxu0 %v270
    %372 = vmatprep.subr.mxu0 0.0
    %373 = vmatpush1.msra.mxu0 %v271
    %374 = vmatprep.subr.mxu0 0.0
    %375 = vmatpush1.msra.mxu0 %v272
    %376 = vmatprep.subr.mxu0 0.0
    %377 = vmatpush1.msra.mxu0 %v273
    %378 = vmatprep.subr.mxu0 0.0
    %379 = vmatpush1.msra.mxu0 %v274
    %380 = vmatprep.subr.mxu0 0.0
    %381 = vmatpush1.msra.mxu0 %v275
    %382 = vmatprep.subr.mxu0 0.0
    %383 = vmatpush1.msra.mxu0 %v276
    %384 = vmatprep.subr.mxu0 0.0
    %385 = vmatpush1.msra.mxu0 %v277
    %386 = vmatprep.subr.mxu0 0.0
    %387 = vmatpush1.msra.mxu0 0.0
    %388 = vmatprep.subr.mxu0 0.0
    %389 = vmatpush1.msra.mxu0 0.0
    %390 = vmatprep.subr.mxu0 0.0
    %391 = vmatpush1.msra.mxu0 0.0
    %392 = vmatprep.subr.mxu0 0.0
    %393 = vmatpush1.msra.mxu0 0.0
    %394 = vmatprep.subr.mxu0 0.0
    %395 = vmatpush1.msra.mxu0 0.0
    %396 = vmatprep.subr.mxu0 0.0
    %397 = vmatpush1.msra.mxu0 0.0
    %398 = vmatprep.subr.mxu0 0.0
    %399 = vmatpush1.msra.mxu0 0.0
    %400 = vmatprep.subr.mxu0 0.0
    %401 = vmatpush1.msra.mxu0 0.0
    %402 = vmatprep.subr.mxu0 0.0
    %403 = vmatpush1.msra.mxu0 0.0
    %404 = vmatprep.subr.mxu0 0.0
    %405 = vmatpush1.msra.mxu0 0.0
    %406 = vmatprep.subr.mxu0 0.0
    %407 = vmatpush1.msra.mxu0 0.0
    %408 = vmatprep.subr.mxu0 0.0
    %409 = vmatpush1.msra.mxu0 0.0
    %410 = vmatprep.subr.mxu0 0.0
    %411 = vmatpush1.msra.mxu0 0.0
    %412 = vmatprep.subr.mxu0 0.0
    %413 = vmatpush1.msra.mxu0 0.0
    %414 = vmatprep.subr.mxu0 0.0
    %415 = vmatpush1.msra.mxu0 0.0
    %416 = vmatprep.subr.mxu0 0.0
    %417 = vmatpush1.msra.mxu0 0.0
    %418 = vmatprep.mubr.f32.mxu0 0.0
    %419 = vmatmul.mubr.f32.gmra.mrb[0].mxu0 %v350
    %v420 = vpop.f32.mrb[0].mxu0
    %v421 = vadd.f32 0.0, %v420
    %v422 = vpop.f32.mrb[0].mxu0
    %423 = vdwg.mxu0
    %v424 = vadd.f32 %v353, %v421
    %v425 = vmax.f32 %v424, 0.0
    %426 = vst [vmem:[%s352] sm:$0xff] %v425
    %s427 = scalar_lea.vmem [#allocation2], 16
    %v428 = vld [vmem:[%s427] sm:$0xff]
    %429 = vmatprep.subr.mxu0 0.0
    %430 = vmatpush1.msra.mxu0 %v262
    %431 = vmatprep.subr.mxu0 0.0
    %432 = vmatpush1.msra.mxu0 %v263
    %433 = vmatprep.subr.mxu0 0.0
    %434 = vmatpush1.msra.mxu0 %v264
    %435 = vmatprep.subr.mxu0 0.0
    %436 = vmatpush1.msra.mxu0 %v265
    %437 = vmatprep.subr.mxu0 0.0
    %438 = vmatpush1.msra.mxu0 %v266
    %439 = vmatprep.subr.mxu0 0.0
    %440 = vmatpush1.msra.mxu0 %v267
    %441 = vmatprep.subr.mxu0 0.0
    %442 = vmatpush1.msra.mxu0 %v268
    %443 = vmatprep.subr.mxu0 0.0
    %444 = vmatpush1.msra.mxu0 %v269
    %445 = vmatprep.subr.mxu0 0.0
    %446 = vmatpush1.msra.mxu0 %v270
    %447 = vmatprep.subr.mxu0 0.0
    %448 = vmatpush1.msra.mxu0 %v271
    %449 = vmatprep.subr.mxu0 0.0
    %450 = vmatpush1.msra.mxu0 %v272
    %451 = vmatprep.subr.mxu0 0.0
    %452 = vmatpush1.msra.mxu0 %v273
    %453 = vmatprep.subr.mxu0 0.0
    %454 = vmatpush1.msra.mxu0 %v274
    %455 = vmatprep.subr.mxu0 0.0
    %456 = vmatpush1.msra.mxu0 %v275
    %457 = vmatprep.subr.mxu0 0.0
    %458 = vmatpush1.msra.mxu0 %v276
    %459 = vmatprep.subr.mxu0 0.0
    %460 = vmatpush1.msra.mxu0 %v277
    %461 = vmatprep.subr.mxu0 0.0
    %462 = vmatpush1.msra.mxu0 0.0
    %463 = vmatprep.subr.mxu0 0.0
    %464 = vmatpush1.msra.mxu0 0.0
    %465 = vmatprep.subr.mxu0 0.0
    %466 = vmatpush1.msra.mxu0 0.0
    %467 = vmatprep.subr.mxu0 0.0
    %468 = vmatpush1.msra.mxu0 0.0
    %469 = vmatprep.subr.mxu0 0.0
    %470 = vmatpush1.msra.mxu0 0.0
    %471 = vmatprep.subr.mxu0 0.0
    %472 = vmatpush1.msra.mxu0 0.0
    %473 = vmatprep.subr.mxu0 0.0
    %474 = vmatpush1.msra.mxu0 0.0
    %475 = vmatprep.subr.mxu0 0.0
    %476 = vmatpush1.msra.mxu0 0.0
    %477 = vmatprep.subr.mxu0 0.0
    %478 = vmatpush1.msra.mxu0 0.0
    %479 = vmatprep.subr.mxu0 0.0
    %480 = vmatpush1.msra.mxu0 0.0
    %481 = vmatprep.subr.mxu0 0.0
    %482 = vmatpush1.msra.mxu0 0.0
    %483 = vmatprep.subr.mxu0 0.0
    %484 = vmatpush1.msra.mxu0 0.0
    %485 = vmatprep.subr.mxu0 0.0
    %486 = vmatpush1.msra.mxu0 0.0
    %487 = vmatprep.subr.mxu0 0.0
    %488 = vmatpush1.msra.mxu0 0.0
    %489 = vmatprep.subr.mxu0 0.0
    %490 = vmatpush1.msra.mxu0 0.0
    %491 = vmatprep.subr.mxu0 0.0
    %492 = vmatpush1.msra.mxu0 0.0
    %493 = vmatprep.mubr.f32.mxu0 0.0
    %494 = vmatmul.mubr.f32.gmra.mrb[0].mxu0 %v425
    %v495 = vpop.f32.mrb[0].mxu0
    %v496 = vadd.f32 0.0, %v495
    %v497 = vpop.f32.mrb[0].mxu0
    %498 = vdwg.mxu0
    %v499 = vadd.f32 %v428, %v496
    %v500 = vmax.f32 %v499, 0.0
    %501 = vst [vmem:[%s427] sm:$0xff] %v500
    %s502 = scalar_lea.vmem [#allocation2], 24
    %v503 = vld [vmem:[%s502] sm:$0xff]
    %504 = vmatprep.subr.mxu0 0.0
    %505 = vmatpush1.msra.mxu0 %v262
    %506 = vmatprep.subr.mxu0 0.0
    %507 = vmatpush1.msra.mxu0 %v263
    %508 = vmatprep.subr.mxu0 0.0
    %509 = vmatpush1.msra.mxu0 %v264
    %510 = vmatprep.subr.mxu0 0.0
    %511 = vmatpush1.msra.mxu0 %v265
    %512 = vmatprep.subr.mxu0 0.0
    %513 = vmatpush1.msra.mxu0 %v266
    %514 = vmatprep.subr.mxu0 0.0
    %515 = vmatpush1.msra.mxu0 %v267
    %516 = vmatprep.subr.mxu0 0.0
    %517 = vmatpush1.msra.mxu0 %v268
    %518 = vmatprep.subr.mxu0 0.0
    %519 = vmatpush1.msra.mxu0 %v269
    %520 = vmatprep.subr.mxu0 0.0
    %521 = vmatpush1.msra.mxu0 %v270
    %522 = vmatprep.subr.mxu0 0.0
    %523 = vmatpush1.msra.mxu0 %v271
    %524 = vmatprep.subr.mxu0 0.0
    %525 = vmatpush1.msra.mxu0 %v272
    %526 = vmatprep.subr.mxu0 0.0
    %527 = vmatpush1.msra.mxu0 %v273
    %528 = vmatprep.subr.mxu0 0.0
    %529 = vmatpush1.msra.mxu0 %v274
    %530 = vmatprep.subr.mxu0 0.0
    %531 = vmatpush1.msra.mxu0 %v275
    %532 = vmatprep.subr.mxu0 0.0
    %533 = vmatpush1.msra.mxu0 %v276
    %534 = vmatprep.subr.mxu0 0.0
    %535 = vmatpush1.msra.mxu0 %v277
    %536 = vmatprep.subr.mxu0 0.0
    %537 = vmatpush1.msra.mxu0 0.0
    %538 = vmatprep.subr.mxu0 0.0
    %539 = vmatpush1.msra.mxu0 0.0
    %540 = vmatprep.subr.mxu0 0.0
    %541 = vmatpush1.msra.mxu0 0.0
    %542 = vmatprep.subr.mxu0 0.0
    %543 = vmatpush1.msra.mxu0 0.0
    %544 = vmatprep.subr.mxu0 0.0
    %545 = vmatpush1.msra.mxu0 0.0
    %546 = vmatprep.subr.mxu0 0.0
    %547 = vmatpush1.msra.mxu0 0.0
    %548 = vmatprep.subr.mxu0 0.0
    %549 = vmatpush1.msra.mxu0 0.0
    %550 = vmatprep.subr.mxu0 0.0
    %551 = vmatpush1.msra.mxu0 0.0
    %552 = vmatprep.subr.mxu0 0.0
    %553 = vmatpush1.msra.mxu0 0.0
    %554 = vmatprep.subr.mxu0 0.0
    %555 = vmatpush1.msra.mxu0 0.0
    %556 = vmatprep.subr.mxu0 0.0
    %557 = vmatpush1.msra.mxu0 0.0
    %558 = vmatprep.subr.mxu0 0.0
    %559 = vmatpush1.msra.mxu0 0.0
    %560 = vmatprep.subr.mxu0 0.0
    %561 = vmatpush1.msra.mxu0 0.0
    %562 = vmatprep.subr.mxu0 0.0
    %563 = vmatpush1.msra.mxu0 0.0
    %564 = vmatprep.subr.mxu0 0.0
    %565 = vmatpush1.msra.mxu0 0.0
    %566 = vmatprep.subr.mxu0 0.0
    %567 = vmatpush1.msra.mxu0 0.0
    %568 = vmatprep.mubr.f32.mxu0 0.0
    %569 = vmatmul.mubr.f32.gmra.mrb[0].mxu0 %v500
    %v570 = vpop.f32.mrb[0].mxu0
    %v571 = vadd.f32 0.0, %v570
    %v572 = vpop.f32.mrb[0].mxu0
    %573 = vdwg.mxu0
    %v574 = vadd.f32 %v503, %v571
    %v575 = vmax.f32 %v574, 0.0
    %576 = vst [vmem:[%s502] sm:$0xff] %v575
    %s577 = scalar_lea.vmem [#allocation2], 32
    %v578 = vld [vmem:[%s577] sm:$0xff]
    %579 = vmatprep.subr.mxu0 0.0
    %580 = vmatpush1.msra.mxu0 %v262
    %581 = vmatprep.subr.mxu0 0.0
    %582 = vmatpush1.msra.mxu0 %v263
    %583 = vmatprep.subr.mxu0 0.0
    %584 = vmatpush1.msra.mxu0 %v264
    %585 = vmatprep.subr.mxu0 0.0
    %586 = vmatpush1.msra.mxu0 %v265
    %587 = vmatprep.subr.mxu0 0.0
    %588 = vmatpush1.msra.mxu0 %v266
    %589 = vmatprep.subr.mxu0 0.0
    %590 = vmatpush1.msra.mxu0 %v267
    %591 = vmatprep.subr.mxu0 0.0
    %592 = vmatpush1.msra.mxu0 %v268
    %593 = vmatprep.subr.mxu0 0.0
    %594 = vmatpush1.msra.mxu0 %v269
    %595 = vmatprep.subr.mxu0 0.0
    %596 = vmatpush1.msra.mxu0 %v270
    %597 = vmatprep.subr.mxu0 0.0
    %598 = vmatpush1.msra.mxu0 %v271
    %599 = vmatprep.subr.mxu0 0.0
    %600 = vmatpush1.msra.mxu0 %v272
    %601 = vmatprep.subr.mxu0 0.0
    %602 = vmatpush1.msra.mxu0 %v273
    %603 = vmatprep.subr.mxu0 0.0
    %604 = vmatpush1.msra.mxu0 %v274
    %605 = vmatprep.subr.mxu0 0.0
    %606 = vmatpush1.msra.mxu0 %v275
    %607 = vmatprep.subr.mxu0 0.0
    %608 = vmatpush1.msra.mxu0 %v276
    %609 = vmatprep.subr.mxu0 0.0
    %610 = vmatpush1.msra.mxu0 %v277
    %611 = vmatprep.subr.mxu0 0.0
    %612 = vmatpush1.msra.mxu0 0.0
    %613 = vmatprep.subr.mxu0 0.0
    %614 = vmatpush1.msra.mxu0 0.0
    %615 = vmatprep.subr.mxu0 0.0
    %616 = vmatpush1.msra.mxu0 0.0
    %617 = vmatprep.subr.mxu0 0.0
    %618 = vmatpush1.msra.mxu0 0.0
    %619 = vmatprep.subr.mxu0 0.0
    %620 = vmatpush1.msra.mxu0 0.0
    %621 = vmatprep.subr.mxu0 0.0
    %622 = vmatpush1.msra.mxu0 0.0
    %623 = vmatprep.subr.mxu0 0.0
    %624 = vmatpush1.msra.mxu0 0.0
    %625 = vmatprep.subr.mxu0 0.0
    %626 = vmatpush1.msra.mxu0 0.0
    %627 = vmatprep.subr.mxu0 0.0
    %628 = vmatpush1.msra.mxu0 0.0
    %629 = vmatprep.subr.mxu0 0.0
    %630 = vmatpush1.msra.mxu0 0.0
    %631 = vmatprep.subr.mxu0 0.0
    %632 = vmatpush1.msra.mxu0 0.0
    %633 = vmatprep.subr.mxu0 0.0
    %634 = vmatpush1.msra.mxu0 0.0
    %635 = vmatprep.subr.mxu0 0.0
    %636 = vmatpush1.msra.mxu0 0.0
    %637 = vmatprep.subr.mxu0 0.0
    %638 = vmatpush1.msra.mxu0 0.0
    %639 = vmatprep.subr.mxu0 0.0
    %640 = vmatpush1.msra.mxu0 0.0
    %641 = vmatprep.subr.mxu0 0.0
    %642 = vmatpush1.msra.mxu0 0.0
    %643 = vmatprep.mubr.f32.mxu0 0.0
    %644 = vmatmul.mubr.f32.gmra.mrb[0].mxu0 %v575
    %v645 = vpop.f32.mrb[0].mxu0
    %v646 = vadd.f32 0.0, %v645
    %v647 = vpop.f32.mrb[0].mxu0
    %648 = vdwg.mxu0
    %v649 = vadd.f32 %v578, %v646
    %v650 = vmax.f32 %v649, 0.0
    %651 = vst [vmem:[%s577] sm:$0xff] %v650
    %s652 = scalar_lea.vmem [#allocation2], 40
    %v653 = vld [vmem:[%s652] sm:$0xff]
    %654 = vmatprep.subr.mxu0 0.0
    %655 = vmatpush1.msra.mxu0 %v262
    %656 = vmatprep.subr.mxu0 0.0
    %657 = vmatpush1.msra.mxu0 %v263
    %658 = vmatprep.subr.mxu0 0.0
    %659 = vmatpush1.msra.mxu0 %v264
    %660 = vmatprep.subr.mxu0 0.0
    %661 = vmatpush1.msra.mxu0 %v265
    %662 = vmatprep.subr.mxu0 0.0
    %663 = vmatpush1.msra.mxu0 %v266
    %664 = vmatprep.subr.mxu0 0.0
    %665 = vmatpush1.msra.mxu0 %v267
    %666 = vmatprep.subr.mxu0 0.0
    %667 = vmatpush1.msra.mxu0 %v268
    %668 = vmatprep.subr.mxu0 0.0
    %669 = vmatpush1.msra.mxu0 %v269
    %670 = vmatprep.subr.mxu0 0.0
    %671 = vmatpush1.msra.mxu0 %v270
    %672 = vmatprep.subr.mxu0 0.0
    %673 = vmatpush1.msra.mxu0 %v271
    %674 = vmatprep.subr.mxu0 0.0
    %675 = vmatpush1.msra.mxu0 %v272
    %676 = vmatprep.subr.mxu0 0.0
    %677 = vmatpush1.msra.mxu0 %v273
    %678 = vmatprep.subr.mxu0 0.0
    %679 = vmatpush1.msra.mxu0 %v274
    %680 = vmatprep.subr.mxu0 0.0
    %681 = vmatpush1.msra.mxu0 %v275
    %682 = vmatprep.subr.mxu0 0.0
    %683 = vmatpush1.msra.mxu0 %v276
    %684 = vmatprep.subr.mxu0 0.0
    %685 = vmatpush1.msra.mxu0 %v277
    %686 = vmatprep.subr.mxu0 0.0
    %687 = vmatpush1.msra.mxu0 0.0
    %688 = vmatprep.subr.mxu0 0.0
    %689 = vmatpush1.msra.mxu0 0.0
    %690 = vmatprep.subr.mxu0 0.0
    %691 = vmatpush1.msra.mxu0 0.0
    %692 = vmatprep.subr.mxu0 0.0
    %693 = vmatpush1.msra.mxu0 0.0
    %694 = vmatprep.subr.mxu0 0.0
    %695 = vmatpush1.msra.mxu0 0.0
    %696 = vmatprep.subr.mxu0 0.0
    %697 = vmatpush1.msra.mxu0 0.0
    %698 = vmatprep.subr.mxu0 0.0
    %699 = vmatpush1.msra.mxu0 0.0
    %700 = vmatprep.subr.mxu0 0.0
    %701 = vmatpush1.msra.mxu0 0.0
    %702 = vmatprep.subr.mxu0 0.0
    %703 = vmatpush1.msra.mxu0 0.0
    %704 = vmatprep.subr.mxu0 0.0
    %705 = vmatpush1.msra.mxu0 0.0
    %706 = vmatprep.subr.mxu0 0.0
    %707 = vmatpush1.msra.mxu0 0.0
    %708 = vmatprep.subr.mxu0 0.0
    %709 = vmatpush1.msra.mxu0 0.0
    %710 = vmatprep.subr.mxu0 0.0
    %711 = vmatpush1.msra.mxu0 0.0
    %712 = vmatprep.subr.mxu0 0.0
    %713 = vmatpush1.msra.mxu0 0.0
    %714 = vmatprep.subr.mxu0 0.0
    %715 = vmatpush1.msra.mxu0 0.0
    %716 = vmatprep.subr.mxu0 0.0
    %717 = vmatpush1.msra.mxu0 0.0
    %718 = vmatprep.mubr.f32.mxu0 0.0
    %719 = vmatmul.mubr.f32.gmra.mrb[0].mxu0 %v650
    %v720 = vpop.f32.mrb[0].mxu0
    %v721 = vadd.f32 0.0, %v720
    %v722 = vpop.f32.mrb[0].mxu0
    %723 = vdwg.mxu0
    %v724 = vadd.f32 %v653, %v721
    %v725 = vmax.f32 %v724, 0.0
    %726 = vst [vmem:[%s652] sm:$0xff] %v725
    %s727 = scalar_lea.vmem [#allocation2], 48
    %v728 = vld [vmem:[%s727] sm:$0xff]
    %729 = vmatprep.subr.mxu0 0.0
    %730 = vmatpush1.msra.mxu0 %v262
    %731 = vmatprep.subr.mxu0 0.0
    %732 = vmatpush1.msra.mxu0 %v263
    %733 = vmatprep.subr.mxu0 0.0
    %734 = vmatpush1.msra.mxu0 %v264
    %735 = vmatprep.subr.mxu0 0.0
    %736 = vmatpush1.msra.mxu0 %v265
    %737 = vmatprep.subr.mxu0 0.0
    %738 = vmatpush1.msra.mxu0 %v266
    %739 = vmatprep.subr.mxu0 0.0
    %740 = vmatpush1.msra.mxu0 %v267
    %741 = vmatprep.subr.mxu0 0.0
    %742 = vmatpush1.msra.mxu0 %v268
    %743 = vmatprep.subr.mxu0 0.0
    %744 = vmatpush1.msra.mxu0 %v269
    %745 = vmatprep.subr.mxu0 0.0
    %746 = vmatpush1.msra.mxu0 %v270
    %747 = vmatprep.subr.mxu0 0.0
    %748 = vmatpush1.msra.mxu0 %v271
    %749 = vmatprep.subr.mxu0 0.0
    %750 = vmatpush1.msra.mxu0 %v272
    %751 = vmatprep.subr.mxu0 0.0
    %752 = vmatpush1.msra.mxu0 %v273
    %753 = vmatprep.subr.mxu0 0.0
    %754 = vmatpush1.msra.mxu0 %v274
    %755 = vmatprep.subr.mxu0 0.0
    %756 = vmatpush1.msra.mxu0 %v275
    %757 = vmatprep.subr.mxu0 0.0
    %758 = vmatpush1.msra.mxu0 %v276
    %759 = vmatprep.subr.mxu0 0.0
    %760 = vmatpush1.msra.mxu0 %v277
    %761 = vmatprep.subr.mxu0 0.0
    %762 = vmatpush1.msra.mxu0 0.0
    %763 = vmatprep.subr.mxu0 0.0
    %764 = vmatpush1.msra.mxu0 0.0
    %765 = vmatprep.subr.mxu0 0.0
    %766 = vmatpush1.msra.mxu0 0.0
    %767 = vmatprep.subr.mxu0 0.0
    %768 = vmatpush1.msra.mxu0 0.0
    %769 = vmatprep.subr.mxu0 0.0
    %770 = vmatpush1.msra.mxu0 0.0
    %771 = vmatprep.subr.mxu0 0.0
    %772 = vmatpush1.msra.mxu0 0.0
    %773 = vmatprep.subr.mxu0 0.0
    %774 = vmatpush1.msra.mxu0 0.0
    %775 = vmatprep.subr.mxu0 0.0
    %776 = vmatpush1.msra.mxu0 0.0
    %777 = vmatprep.subr.mxu0 0.0
    %778 = vmatpush1.msra.mxu0 0.0
    %779 = vmatprep.subr.mxu0 0.0
    %780 = vmatpush1.msra.mxu0 0.0
    %781 = vmatprep.subr.mxu0 0.0
    %782 = vmatpush1.msra.mxu0 0.0
    %783 = vmatprep.subr.mxu0 0.0
    %784 = vmatpush1.msra.mxu0 0.0
    %785 = vmatprep.subr.mxu0 0.0
    %786 = vmatpush1.msra.mxu0 0.0
    %787 = vmatprep.subr.mxu0 0.0
    %788 = vmatpush1.msra.mxu0 0.0
    %789 = vmatprep.subr.mxu0 0.0
    %790 = vmatpush1.msra.mxu0 0.0
    %791 = vmatprep.subr.mxu0 0.0
    %792 = vmatpush1.msra.mxu0 0.0
    %793 = vmatprep.mubr.f32.mxu0 0.0
    %794 = vmatmul.mubr.f32.gmra.mrb[0].mxu0 %v725
    %v795 = vpop.f32.mrb[0].mxu0
    %v796 = vadd.f32 0.0, %v795
    %v797 = vpop.f32.mrb[0].mxu0
    %798 = vdwg.mxu0
    %v799 = vadd.f32 %v728, %v796
    %v800 = vmax.f32 %v799, 0.0
    %801 = vst [vmem:[%s727] sm:$0xff] %v800
    %s802 = scalar_lea.vmem [#allocation2], 56
    %v803 = vld [vmem:[%s802] sm:$0xff]
    %804 = vmatprep.subr.mxu0 0.0
    %805 = vmatpush1.msra.mxu0 %v262
    %806 = vmatprep.subr.mxu0 0.0
    %807 = vmatpush1.msra.mxu0 %v263
    %808 = vmatprep.subr.mxu0 0.0
    %809 = vmatpush1.msra.mxu0 %v264
    %810 = vmatprep.subr.mxu0 0.0
    %811 = vmatpush1.msra.mxu0 %v265
    %812 = vmatprep.subr.mxu0 0.0
    %813 = vmatpush1.msra.mxu0 %v266
    %814 = vmatprep.subr.mxu0 0.0
    %815 = vmatpush1.msra.mxu0 %v267
    %816 = vmatprep.subr.mxu0 0.0
    %817 = vmatpush1.msra.mxu0 %v268
    %818 = vmatprep.subr.mxu0 0.0
    %819 = vmatpush1.msra.mxu0 %v269
    %820 = vmatprep.subr.mxu0 0.0
    %821 = vmatpush1.msra.mxu0 %v270
    %822 = vmatprep.subr.mxu0 0.0
    %823 = vmatpush1.msra.mxu0 %v271
    %824 = vmatprep.subr.mxu0 0.0
    %825 = vmatpush1.msra.mxu0 %v272
    %826 = vmatprep.subr.mxu0 0.0
    %827 = vmatpush1.msra.mxu0 %v273
    %828 = vmatprep.subr.mxu0 0.0
    %829 = vmatpush1.msra.mxu0 %v274
    %830 = vmatprep.subr.mxu0 0.0
    %831 = vmatpush1.msra.mxu0 %v275
    %832 = vmatprep.subr.mxu0 0.0
    %833 = vmatpush1.msra.mxu0 %v276
    %834 = vmatprep.subr.mxu0 0.0
    %835 = vmatpush1.msra.mxu0 %v277
    %836 = vmatprep.subr.mxu0 0.0
    %837 = vmatpush1.msra.mxu0 0.0
    %838 = vmatprep.subr.mxu0 0.0
    %839 = vmatpush1.msra.mxu0 0.0
    %840 = vmatprep.subr.mxu0 0.0
    %841 = vmatpush1.msra.mxu0 0.0
    %842 = vmatprep.subr.mxu0 0.0
    %843 = vmatpush1.msra.mxu0 0.0
    %844 = vmatprep.subr.mxu0 0.0
    %845 = vmatpush1.msra.mxu0 0.0
    %846 = vmatprep.subr.mxu0 0.0
    %847 = vmatpush1.msra.mxu0 0.0
    %848 = vmatprep.subr.mxu0 0.0
    %849 = vmatpush1.msra.mxu0 0.0
    %850 = vmatprep.subr.mxu0 0.0
    %851 = vmatpush1.msra.mxu0 0.0
    %852 = vmatprep.subr.mxu0 0.0
    %853 = vmatpush1.msra.mxu0 0.0
    %854 = vmatprep.subr.mxu0 0.0
    %855 = vmatpush1.msra.mxu0 0.0
    %856 = vmatprep.subr.mxu0 0.0
    %857 = vmatpush1.msra.mxu0 0.0
    %858 = vmatprep.subr.mxu0 0.0
    %859 = vmatpush1.msra.mxu0 0.0
    %860 = vmatprep.subr.mxu0 0.0
    %861 = vmatpush1.msra.mxu0 0.0
    %862 = vmatprep.subr.mxu0 0.0
    %863 = vmatpush1.msra.mxu0 0.0
    %864 = vmatprep.subr.mxu0 0.0
    %865 = vmatpush1.msra.mxu0 0.0
    %866 = vmatprep.subr.mxu0 0.0
    %867 = vmatpush1.msra.mxu0 0.0
    %868 = vmatprep.mubr.f32.mxu0 0.0
    %869 = vmatmul.mubr.f32.gmra.mrb[0].mxu0 %v800
    %v870 = vpop.f32.mrb[0].mxu0
    %v871 = vadd.f32 0.0, %v870
    %v872 = vpop.f32.mrb[0].mxu0
    %873 = vdwg.mxu0
    %v874 = vadd.f32 %v803, %v871
    %v875 = vmax.f32 %v874, 0.0
    %876 = vst [vmem:[%s802] sm:$0xff] %v875
    %877 = vst [vmem:[#allocation15] sm:$0xff] %v875
    %v878 = vld [vmem:[#allocation2] sm:$0xff]
    %v879 = vld [vmem:[#allocation2 + $0x8] sm:$0xff]
    %v880 = vld [vmem:[#allocation2 + $0x10] sm:$0xff]
    %v881 = vld [vmem:[#allocation2 + $0x18] sm:$0xff]
    %v882 = vld [vmem:[#allocation2 + $0x20] sm:$0xff]
    %v883 = vld [vmem:[#allocation2 + $0x28] sm:$0xff]
    %v884 = vld [vmem:[#allocation2 + $0x30] sm:$0xff]
    %v885 = vld [vmem:[#allocation2 + $0x38] sm:$0xff]
    %v886 = vld [vmem:[#allocation9] sm:$0xff]
    %v887 = vld [vmem:[#allocation9 + $0x8] sm:$0xff]
    %v888 = vld [vmem:[#allocation9 + $0x10] sm:$0xff]
    %v889 = vld [vmem:[#allocation9 + $0x18] sm:$0xff]
    %v890 = vld [vmem:[#allocation9 + $0x20] sm:$0xff]
    %v891 = vld [vmem:[#allocation9 + $0x28] sm:$0xff]
    %v892 = vld [vmem:[#allocation9 + $0x30] sm:$0xff]
    %v893 = vld [vmem:[#allocation9 + $0x38] sm:$0xff]
    %v894 = vld [vmem:[#allocation9 + $0x40] sm:$0xff]
    %v895 = vld [vmem:[#allocation9 + $0x48] sm:$0xff]
    %v896 = vld [vmem:[#allocation9 + $0x50] sm:$0xff]
    %v897 = vld [vmem:[#allocation9 + $0x58] sm:$0xff]
    %v898 = vld [vmem:[#allocation9 + $0x60] sm:$0xff]
    %v899 = vld [vmem:[#allocation9 + $0x68] sm:$0xff]
    %v900 = vld [vmem:[#allocation9 + $0x70] sm:$0xff]
    %v901 = vld [vmem:[#allocation9 + $0x78] sm:$0xff]
    %v902 = vld [vmem:[%s6] sm:$0x1]
    %v904 = vlaneseq
    %v905 = vshrl.u32 %v904, 7
    %v906 = vsub.s32 0, %v905
    %v907 = vrot.slane %v902, %v906
    %909 = vmatprep.subr.mxu0 0.0
    %910 = vmatpush1.msra.mxu0 %v886
    %911 = vmatprep.subr.mxu0 0.0
    %912 = vmatpush1.msra.mxu0 %v887
    %913 = vmatprep.subr.mxu0 0.0
    %914 = vmatpush1.msra.mxu0 %v888
    %915 = vmatprep.subr.mxu0 0.0
    %916 = vmatpush1.msra.mxu0 %v889
    %917 = vmatprep.subr.mxu0 0.0
    %918 = vmatpush1.msra.mxu0 %v890
    %919 = vmatprep.subr.mxu0 0.0
    %920 = vmatpush1.msra.mxu0 %v891
    %921 = vmatprep.subr.mxu0 0.0
    %922 = vmatpush1.msra.mxu0 %v892
    %923 = vmatprep.subr.mxu0 0.0
    %924 = vmatpush1.msra.mxu0 %v893
    %925 = vmatprep.subr.mxu0 0.0
    %926 = vmatpush1.msra.mxu0 %v894
    %927 = vmatprep.subr.mxu0 0.0
    %928 = vmatpush1.msra.mxu0 %v895
    %929 = vmatprep.subr.mxu0 0.0
    %930 = vmatpush1.msra.mxu0 %v896
    %931 = vmatprep.subr.mxu0 0.0
    %932 = vmatpush1.msra.mxu0 %v897
    %933 = vmatprep.subr.mxu0 0.0
    %934 = vmatpush1.msra.mxu0 %v898
    %935 = vmatprep.subr.mxu0 0.0
    %936 = vmatpush1.msra.mxu0 %v899
    %937 = vmatprep.subr.mxu0 0.0
    %938 = vmatpush1.msra.mxu0 %v900
    %939 = vmatprep.subr.mxu0 0.0
    %940 = vmatpush1.msra.mxu0 %v901
    %941 = vmatprep.subr.mxu0 0.0
    %942 = vmatpush1.msra.mxu0 0.0
    %943 = vmatprep.subr.mxu0 0.0
    %944 = vmatpush1.msra.mxu0 0.0
    %945 = vmatprep.subr.mxu0 0.0
    %946 = vmatpush1.msra.mxu0 0.0
    %947 = vmatprep.subr.mxu0 0.0
    %948 = vmatpush1.msra.mxu0 0.0
    %949 = vmatprep.subr.mxu0 0.0
    %950 = vmatpush1.msra.mxu0 0.0
    %951 = vmatprep.subr.mxu0 0.0
    %952 = vmatpush1.msra.mxu0 0.0
    %953 = vmatprep.subr.mxu0 0.0
    %954 = vmatpush1.msra.mxu0 0.0
    %955 = vmatprep.subr.mxu0 0.0
    %956 = vmatpush1.msra.mxu0 0.0
    %957 = vmatprep.subr.mxu0 0.0
    %958 = vmatpush1.msra.mxu0 0.0
    %959 = vmatprep.subr.mxu0 0.0
    %960 = vmatpush1.msra.mxu0 0.0
    %961 = vmatprep.subr.mxu0 0.0
    %962 = vmatpush1.msra.mxu0 0.0
    %963 = vmatprep.subr.mxu0 0.0
    %964 = vmatpush1.msra.mxu0 0.0
    %965 = vmatprep.subr.mxu0 0.0
    %966 = vmatpush1.msra.mxu0 0.0
    %967 = vmatprep.subr.mxu0 0.0
    %968 = vmatpush1.msra.mxu0 0.0
    %969 = vmatprep.subr.mxu0 0.0
    %970 = vmatpush1.msra.mxu0 0.0
    %971 = vmatprep.subr.mxu0 0.0
    %972 = vmatpush1.msra.mxu0 0.0
    %973 = vmatprep.mubr.f32.mxu0 0.0
    %974 = vmatmul.mubr.f32.gmra.mrb[0].mxu0 %v878
    %v975 = vpop.f32.mrb[0].mxu0
    %v976 = vadd.f32 %v907, %v975
    %v977 = vpop.f32.mrb[0].mxu0
    %978 = vmatprep.mubr.f32.mxu0 0.0
    %979 = vmatmul.mubr.f32.gmra.mrb[0].mxu0 %v879
    %v980 = vpop.f32.mrb[0].mxu0
    %v981 = vadd.f32 %v907, %v980
    %v982 = vpop.f32.mrb[0].mxu0
    %983 = vmatprep.mubr.f32.mxu0 0.0
    %984 = vmatmul.mubr.f32.gmra.mrb[0].mxu0 %v880
    %v985 = vpop.f32.mrb[0].mxu0
    %v986 = vadd.f32 %v907, %v985
    %v987 = vpop.f32.mrb[0].mxu0
    %988 = vmatprep.mubr.f32.mxu0 0.0
    %989 = vmatmul.mubr.f32.gmra.mrb[0].mxu0 %v881
    %v990 = vpop.f32.mrb[0].mxu0
    %v991 = vadd.f32 %v907, %v990
    %v992 = vpop.f32.mrb[0].mxu0
    %993 = vmatprep.mubr.f32.mxu0 0.0
    %994 = vmatmul.mubr.f32.gmra.mrb[0].mxu0 %v882
    %v995 = vpop.f32.mrb[0].mxu0
    %v996 = vadd.f32 %v907, %v995
    %v997 = vpop.f32.mrb[0].mxu0
    %998 = vmatprep.mubr.f32.mxu0 0.0
    %999 = vmatmul.mubr.f32.gmra.mrb[0].mxu0 %v883
    %v1000 = vpop.f32.mrb[0].mxu0
    %v1001 = vadd.f32 %v907, %v1000
    %v1002 = vpop.f32.mrb[0].mxu0
    %1003 = vmatprep.mubr.f32.mxu0 0.0
    %1004 = vmatmul.mubr.f32.gmra.mrb[0].mxu0 %v884
    %v1005 = vpop.f32.mrb[0].mxu0
    %v1006 = vadd.f32 %v907, %v1005
    %v1007 = vpop.f32.mrb[0].mxu0
    %1008 = vmatprep.mubr.f32.mxu0 0.0
    %1009 = vmatmul.mubr.f32.gmra.mrb[0].mxu0 %v885
    %v1010 = vpop.f32.mrb[0].mxu0
    %v1011 = vadd.f32 %v907, %v1010
    %v1012 = vpop.f32.mrb[0].mxu0
    %1013 = vdwg.mxu0
    %1014 = vst [vmem:[#allocation2] sm:$0xff] %v976
    %1015 = vst [vmem:[#allocation2 + $0x8] sm:$0xff] %v981
    %1016 = vst [vmem:[#allocation2 + $0x10] sm:$0xff] %v986
    %1017 = vst [vmem:[#allocation2 + $0x18] sm:$0xff] %v991
    %1018 = vst [vmem:[#allocation2 + $0x20] sm:$0xff] %v996
    %1019 = vst [vmem:[#allocation2 + $0x28] sm:$0xff] %v1001
    %1020 = vst [vmem:[#allocation2 + $0x30] sm:$0xff] %v1006
    %1021 = vst [vmem:[#allocation2 + $0x38] sm:$0xff] %v1011
    %v1022 = vld [vmem:[#allocation11] sm:$0xff]
    %v1023 = vld [vmem:[#allocation11 + $0x8] sm:$0xff]
    %v1024 = vld [vmem:[#allocation11 + $0x10] sm:$0xff]
    %v1025 = vld [vmem:[#allocation11 + $0x18] sm:$0xff]
    %v1026 = vld [vmem:[#allocation11 + $0x20] sm:$0xff]
    %v1027 = vld [vmem:[#allocation11 + $0x28] sm:$0xff]
    %v1028 = vld [vmem:[#allocation11 + $0x30] sm:$0xff]
    %v1029 = vld [vmem:[#allocation11 + $0x38] sm:$0xff]
    %v1030 = vld [vmem:[#allocation11 + $0x40] sm:$0xff]
    %v1031 = vld [vmem:[#allocation11 + $0x48] sm:$0xff]
    %v1032 = vld [vmem:[#allocation11 + $0x50] sm:$0xff]
    %v1033 = vld [vmem:[#allocation11 + $0x58] sm:$0xff]
    %v1034 = vld [vmem:[#allocation11 + $0x60] sm:$0xff]
    %v1035 = vld [vmem:[#allocation11 + $0x68] sm:$0xff]
    %v1036 = vld [vmem:[#allocation11 + $0x70] sm:$0xff]
    %v1037 = vld [vmem:[#allocation11 + $0x78] sm:$0xff]
    %v1038 = vld [vmem:[#allocation2] sm:$0xff]
    %1039 = vmatprep.subr.mxu0 0.0
    %1040 = vmatpush1.msra.mxu0 %v1022
    %1041 = vmatprep.subr.mxu0 0.0
    %1042 = vmatpush1.msra.mxu0 %v1023
    %1043 = vmatprep.subr.mxu0 0.0
    %1044 = vmatpush1.msra.mxu0 %v1024
    %1045 = vmatprep.subr.mxu0 0.0
    %1046 = vmatpush1.msra.mxu0 %v1025
    %1047 = vmatprep.subr.mxu0 0.0
    %1048 = vmatpush1.msra.mxu0 %v1026
    %1049 = vmatprep.subr.mxu0 0.0
    %1050 = vmatpush1.msra.mxu0 %v1027
    %1051 = vmatprep.subr.mxu0 0.0
    %1052 = vmatpush1.msra.mxu0 %v1028
    %1053 = vmatprep.subr.mxu0 0.0
    %1054 = vmatpush1.msra.mxu0 %v1029
    %1055 = vmatprep.subr.mxu0 0.0
    %1056 = vmatpush1.msra.mxu0 %v1030
    %1057 = vmatprep.subr.mxu0 0.0
    %1058 = vmatpush1.msra.mxu0 %v1031
    %1059 = vmatprep.subr.mxu0 0.0
    %1060 = vmatpush1.msra.mxu0 %v1032
    %1061 = vmatprep.subr.mxu0 0.0
    %1062 = vmatpush1.msra.mxu0 %v1033
    %1063 = vmatprep.subr.mxu0 0.0
    %1064 = vmatpush1.msra.mxu0 %v1034
    %1065 = vmatprep.subr.mxu0 0.0
    %1066 = vmatpush1.msra.mxu0 %v1035
    %1067 = vmatprep.subr.mxu0 0.0
    %1068 = vmatpush1.msra.mxu0 %v1036
    %1069 = vmatprep.subr.mxu0 0.0
    %1070 = vmatpush1.msra.mxu0 %v1037
    %1071 = vmatprep.subr.mxu0 0.0
    %1072 = vmatpush1.msra.mxu0 0.0
    %1073 = vmatprep.subr.mxu0 0.0
    %1074 = vmatpush1.msra.mxu0 0.0
    %1075 = vmatprep.subr.mxu0 0.0
    %1076 = vmatpush1.msra.mxu0 0.0
    %1077 = vmatprep.subr.mxu0 0.0
    %1078 = vmatpush1.msra.mxu0 0.0
    %1079 = vmatprep.subr.mxu0 0.0
    %1080 = vmatpush1.msra.mxu0 0.0
    %1081 = vmatprep.subr.mxu0 0.0
    %1082 = vmatpush1.msra.mxu0 0.0
    %1083 = vmatprep.subr.mxu0 0.0
    %1084 = vmatpush1.msra.mxu0 0.0
    %1085 = vmatprep.subr.mxu0 0.0
    %1086 = vmatpush1.msra.mxu0 0.0
    %1087 = vmatprep.subr.mxu0 0.0
    %1088 = vmatpush1.msra.mxu0 0.0
    %1089 = vmatprep.subr.mxu0 0.0
    %1090 = vmatpush1.msra.mxu0 0.0
    %1091 = vmatprep.subr.mxu0 0.0
    %1092 = vmatpush1.msra.mxu0 0.0
    %1093 = vmatprep.subr.mxu0 0.0
    %1094 = vmatpush1.msra.mxu0 0.0
    %1095 = vmatprep.subr.mxu0 0.0
    %1096 = vmatpush1.msra.mxu0 0.0
    %1097 = vmatprep.subr.mxu0 0.0
    %1098 = vmatpush1.msra.mxu0 0.0
    %1099 = vmatprep.subr.mxu0 0.0
    %1100 = vmatpush1.msra.mxu0 0.0
    %1101 = vmatprep.subr.mxu0 0.0
    %1102 = vmatpush1.msra.mxu0 0.0
    %1103 = vmatprep.mubr.f32.mxu0 0.0
    %1104 = vmatmul.mubr.f32.gmra.mrb[0].mxu0 0.0
    %v1105 = vpop.f32.mrb[0].mxu0
    %v1106 = vadd.f32 0.0, %v1105
    %v1107 = vpop.f32.mrb[0].mxu0
    %1108 = vdwg.mxu0
    %v1109 = vadd.f32 %v1038, %v1106
    %v1110 = vmax.f32 %v1109, 0.0
    %1111 = vst [vmem:[#allocation2] sm:$0xff] %v1110
    %v1112 = vld [vmem:[%s352] sm:$0xff]
    %1113 = vmatprep.subr.mxu0 0.0
    %1114 = vmatpush1.msra.mxu0 %v1022
    %1115 = vmatprep.subr.mxu0 0.0
    %1116 = vmatpush1.msra.mxu0 %v1023
    %1117 = vmatprep.subr.mxu0 0.0
    %1118 = vmatpush1.msra.mxu0 %v1024
    %1119 = vmatprep.subr.mxu0 0.0
    %1120 = vmatpush1.msra.mxu0 %v1025
    %1121 = vmatprep.subr.mxu0 0.0
    %1122 = vmatpush1.msra.mxu0 %v1026
    %1123 = vmatprep.subr.mxu0 0.0
    %1124 = vmatpush1.msra.mxu0 %v1027
    %1125 = vmatprep.subr.mxu0 0.0
    %1126 = vmatpush1.msra.mxu0 %v1028
    %1127 = vmatprep.subr.mxu0 0.0
    %1128 = vmatpush1.msra.mxu0 %v1029
    %1129 = vmatprep.subr.mxu0 0.0
    %1130 = vmatpush1.msra.mxu0 %v1030
    %1131 = vmatprep.subr.mxu0 0.0
    %1132 = vmatpush1.msra.mxu0 %v1031
    %1133 = vmatprep.subr.mxu0 0.0
    %1134 = vmatpush1.msra.mxu0 %v1032
    %1135 = vmatprep.subr.mxu0 0.0
    %1136 = vmatpush1.msra.mxu0 %v1033
    %1137 = vmatprep.subr.mxu0 0.0
    %1138 = vmatpush1.msra.mxu0 %v1034
    %1139 = vmatprep.subr.mxu0 0.0
    %1140 = vmatpush1.msra.mxu0 %v1035
    %1141 = vmatprep.subr.mxu0 0.0
    %1142 = vmatpush1.msra.mxu0 %v1036
    %1143 = vmatprep.subr.mxu0 0.0
    %1144 = vmatpush1.msra.mxu0 %v1037
    %1145 = vmatprep.subr.mxu0 0.0
    %1146 = vmatpush1.msra.mxu0 0.0
    %1147 = vmatprep.subr.mxu0 0.0
    %1148 = vmatpush1.msra.mxu0 0.0
    %1149 = vmatprep.subr.mxu0 0.0
    %1150 = vmatpush1.msra.mxu0 0.0
    %1151 = vmatprep.subr.mxu0 0.0
    %1152 = vmatpush1.msra.mxu0 0.0
    %1153 = vmatprep.subr.mxu0 0.0
    %1154 = vmatpush1.msra.mxu0 0.0
    %1155 = vmatprep.subr.mxu0 0.0
    %1156 = vmatpush1.msra.mxu0 0.0
    %1157 = vmatprep.subr.mxu0 0.0
    %1158 = vmatpush1.msra.mxu0 0.0
    %1159 = vmatprep.subr.mxu0 0.0
    %1160 = vmatpush1.msra.mxu0 0.0
    %1161 = vmatprep.subr.mxu0 0.0
    %1162 = vmatpush1.msra.mxu0 0.0
    %1163 = vmatprep.subr.mxu0 0.0
    %1164 = vmatpush1.msra.mxu0 0.0
    %1165 = vmatprep.subr.mxu0 0.0
    %1166 = vmatpush1.msra.mxu0 0.0
    %1167 = vmatprep.subr.mxu0 0.0
    %1168 = vmatpush1.msra.mxu0 0.0
    %1169 = vmatprep.subr.mxu0 0.0
    %1170 = vmatpush1.msra.mxu0 0.0
    %1171 = vmatprep.subr.mxu0 0.0
    %1172 = vmatpush1.msra.mxu0 0.0
    %1173 = vmatprep.subr.mxu0 0.0
    %1174 = vmatpush1.msra.mxu0 0.0
    %1175 = vmatprep.subr.mxu0 0.0
    %1176 = vmatpush1.msra.mxu0 0.0
    %1177 = vmatprep.mubr.f32.mxu0 0.0
    %1178 = vmatmul.mubr.f32.gmra.mrb[0].mxu0 %v1110
    %v1179 = vpop.f32.mrb[0].mxu0
    %v1180 = vadd.f32 0.0, %v1179
    %v1181 = vpop.f32.mrb[0].mxu0
    %1182 = vdwg.mxu0
    %v1183 = vadd.f32 %v1112, %v1180
    %v1184 = vmax.f32 %v1183, 0.0
    %1185 = vst [vmem:[%s352] sm:$0xff] %v1184
    %v1186 = vld [vmem:[%s427] sm:$0xff]
    %1187 = vmatprep.subr.mxu0 0.0
    %1188 = vmatpush1.msra.mxu0 %v1022
    %1189 = vmatprep.subr.mxu0 0.0
    %1190 = vmatpush1.msra.mxu0 %v1023
    %1191 = vmatprep.subr.mxu0 0.0
    %1192 = vmatpush1.msra.mxu0 %v1024
    %1193 = vmatprep.subr.mxu0 0.0
    %1194 = vmatpush1.msra.mxu0 %v1025
    %1195 = vmatprep.subr.mxu0 0.0
    %1196 = vmatpush1.msra.mxu0 %v1026
    %1197 = vmatprep.subr.mxu0 0.0
    %1198 = vmatpush1.msra.mxu0 %v1027
    %1199 = vmatprep.subr.mxu0 0.0
    %1200 = vmatpush1.msra.mxu0 %v1028
    %1201 = vmatprep.subr.mxu0 0.0
    %1202 = vmatpush1.msra.mxu0 %v1029
    %1203 = vmatprep.subr.mxu0 0.0
    %1204 = vmatpush1.msra.mxu0 %v1030
    %1205 = vmatprep.subr.mxu0 0.0
    %1206 = vmatpush1.msra.mxu0 %v1031
    %1207 = vmatprep.subr.mxu0 0.0
    %1208 = vmatpush1.msra.mxu0 %v1032
    %1209 = vmatprep.subr.mxu0 0.0
    %1210 = vmatpush1.msra.mxu0 %v1033
    %1211 = vmatprep.subr.mxu0 0.0
    %1212 = vmatpush1.msra.mxu0 %v1034
    %1213 = vmatprep.subr.mxu0 0.0
    %1214 = vmatpush1.msra.mxu0 %v1035
    %1215 = vmatprep.subr.mxu0 0.0
    %1216 = vmatpush1.msra.mxu0 %v1036
    %1217 = vmatprep.subr.mxu0 0.0
    %1218 = vmatpush1.msra.mxu0 %v1037
    %1219 = vmatprep.subr.mxu0 0.0
    %1220 = vmatpush1.msra.mxu0 0.0
    %1221 = vmatprep.subr.mxu0 0.0
    %1222 = vmatpush1.msra.mxu0 0.0
    %1223 = vmatprep.subr.mxu0 0.0
    %1224 = vmatpush1.msra.mxu0 0.0
    %1225 = vmatprep.subr.mxu0 0.0
    %1226 = vmatpush1.msra.mxu0 0.0
    %1227 = vmatprep.subr.mxu0 0.0
    %1228 = vmatpush1.msra.mxu0 0.0
    %1229 = vmatprep.subr.mxu0 0.0
    %1230 = vmatpush1.msra.mxu0 0.0
    %1231 = vmatprep.subr.mxu0 0.0
    %1232 = vmatpush1.msra.mxu0 0.0
    %1233 = vmatprep.subr.mxu0 0.0
    %1234 = vmatpush1.msra.mxu0 0.0
    %1235 = vmatprep.subr.mxu0 0.0
    %1236 = vmatpush1.msra.mxu0 0.0
    %1237 = vmatprep.subr.mxu0 0.0
    %1238 = vmatpush1.msra.mxu0 0.0
    %1239 = vmatprep.subr.mxu0 0.0
    %1240 = vmatpush1.msra.mxu0 0.0
    %1241 = vmatprep.subr.mxu0 0.0
    %1242 = vmatpush1.msra.mxu0 0.0
    %1243 = vmatprep.subr.mxu0 0.0
    %1244 = vmatpush1.msra.mxu0 0.0
    %1245 = vmatprep.subr.mxu0 0.0
    %1246 = vmatpush1.msra.mxu0 0.0
    %1247 = vmatprep.subr.mxu0 0.0
    %1248 = vmatpush1.msra.mxu0 0.0
    %1249 = vmatprep.subr.mxu0 0.0
    %1250 = vmatpush1.msra.mxu0 0.0
    %1251 = vmatprep.mubr.f32.mxu0 0.0
    %1252 = vmatmul.mubr.f32.gmra.mrb[0].mxu0 %v1184
    %v1253 = vpop.f32.mrb[0].mxu0
    %v1254 = vadd.f32 0.0, %v1253
    %v1255 = vpop.f32.mrb[0].mxu0
    %1256 = vdwg.mxu0
    %v1257 = vadd.f32 %v1186, %v1254
    %v1258 = vmax.f32 %v1257, 0.0
    %1259 = vst [vmem:[%s427] sm:$0xff] %v1258
    %v1260 = vld [vmem:[%s502] sm:$0xff]
    %1261 = vmatprep.subr.mxu0 0.0
    %1262 = vmatpush1.msra.mxu0 %v1022
    %1263 = vmatprep.subr.mxu0 0.0
    %1264 = vmatpush1.msra.mxu0 %v1023
    %1265 = vmatprep.subr.mxu0 0.0
    %1266 = vmatpush1.msra.mxu0 %v1024
    %1267 = vmatprep.subr.mxu0 0.0
    %1268 = vmatpush1.msra.mxu0 %v1025
    %1269 = vmatprep.subr.mxu0 0.0
    %1270 = vmatpush1.msra.mxu0 %v1026
    %1271 = vmatprep.subr.mxu0 0.0
    %1272 = vmatpush1.msra.mxu0 %v1027
    %1273 = vmatprep.subr.mxu0 0.0
    %1274 = vmatpush1.msra.mxu0 %v1028
    %1275 = vmatprep.subr.mxu0 0.0
    %1276 = vmatpush1.msra.mxu0 %v1029
    %1277 = vmatprep.subr.mxu0 0.0
    %1278 = vmatpush1.msra.mxu0 %v1030
    %1279 = vmatprep.subr.mxu0 0.0
    %1280 = vmatpush1.msra.mxu0 %v1031
    %1281 = vmatprep.subr.mxu0 0.0
    %1282 = vmatpush1.msra.mxu0 %v1032
    %1283 = vmatprep.subr.mxu0 0.0
    %1284 = vmatpush1.msra.mxu0 %v1033
    %1285 = vmatprep.subr.mxu0 0.0
    %1286 = vmatpush1.msra.mxu0 %v1034
    %1287 = vmatprep.subr.mxu0 0.0
    %1288 = vmatpush1.msra.mxu0 %v1035
    %1289 = vmatprep.subr.mxu0 0.0
    %1290 = vmatpush1.msra.mxu0 %v1036
    %1291 = vmatprep.subr.mxu0 0.0
    %1292 = vmatpush1.msra.mxu0 %v1037
    %1293 = vmatprep.subr.mxu0 0.0
    %1294 = vmatpush1.msra.mxu0 0.0
    %1295 = vmatprep.subr.mxu0 0.0
    %1296 = vmatpush1.msra.mxu0 0.0
    %1297 = vmatprep.subr.mxu0 0.0
    %1298 = vmatpush1.msra.mxu0 0.0
    %1299 = vmatprep.subr.mxu0 0.0
    %1300 = vmatpush1.msra.mxu0 0.0
    %1301 = vmatprep.subr.mxu0 0.0
    %1302 = vmatpush1.msra.mxu0 0.0
    %1303 = vmatprep.subr.mxu0 0.0
    %1304 = vmatpush1.msra.mxu0 0.0
    %1305 = vmatprep.subr.mxu0 0.0
    %1306 = vmatpush1.msra.mxu0 0.0
    %1307 = vmatprep.subr.mxu0 0.0
    %1308 = vmatpush1.msra.mxu0 0.0
    %1309 = vmatprep.subr.mxu0 0.0
    %1310 = vmatpush1.msra.mxu0 0.0
    %1311 = vmatprep.subr.mxu0 0.0
    %1312 = vmatpush1.msra.mxu0 0.0
    %1313 = vmatprep.subr.mxu0 0.0
    %1314 = vmatpush1.msra.mxu0 0.0
    %1315 = vmatprep.subr.mxu0 0.0
    %1316 = vmatpush1.msra.mxu0 0.0
    %1317 = vmatprep.subr.mxu0 0.0
    %1318 = vmatpush1.msra.mxu0 0.0
    %1319 = vmatprep.subr.mxu0 0.0
    %1320 = vmatpush1.msra.mxu0 0.0
    %1321 = vmatprep.subr.mxu0 0.0
    %1322 = vmatpush1.msra.mxu0 0.0
    %1323 = vmatprep.subr.mxu0 0.0
    %1324 = vmatpush1.msra.mxu0 0.0
    %1325 = vmatprep.mubr.f32.mxu0 0.0
    %1326 = vmatmul.mubr.f32.gmra.mrb[0].mxu0 %v1258
    %v1327 = vpop.f32.mrb[0].mxu0
    %v1328 = vadd.f32 0.0, %v1327
    %v1329 = vpop.f32.mrb[0].mxu0
    %1330 = vdwg.mxu0
    %v1331 = vadd.f32 %v1260, %v1328
    %v1332 = vmax.f32 %v1331, 0.0
    %1333 = vst [vmem:[%s502] sm:$0xff] %v1332
    %v1334 = vld [vmem:[%s577] sm:$0xff]
    %1335 = vmatprep.subr.mxu0 0.0
    %1336 = vmatpush1.msra.mxu0 %v1022
    %1337 = vmatprep.subr.mxu0 0.0
    %1338 = vmatpush1.msra.mxu0 %v1023
    %1339 = vmatprep.subr.mxu0 0.0
    %1340 = vmatpush1.msra.mxu0 %v1024
    %1341 = vmatprep.subr.mxu0 0.0
    %1342 = vmatpush1.msra.mxu0 %v1025
    %1343 = vmatprep.subr.mxu0 0.0
    %1344 = vmatpush1.msra.mxu0 %v1026
    %1345 = vmatprep.subr.mxu0 0.0
    %1346 = vmatpush1.msra.mxu0 %v1027
    %1347 = vmatprep.subr.mxu0 0.0
    %1348 = vmatpush1.msra.mxu0 %v1028
    %1349 = vmatprep.subr.mxu0 0.0
    %1350 = vmatpush1.msra.mxu0 %v1029
    %1351 = vmatprep.subr.mxu0 0.0
    %1352 = vmatpush1.msra.mxu0 %v1030
    %1353 = vmatprep.subr.mxu0 0.0
    %1354 = vmatpush1.msra.mxu0 %v1031
    %1355 = vmatprep.subr.mxu0 0.0
    %1356 = vmatpush1.msra.mxu0 %v1032
    %1357 = vmatprep.subr.mxu0 0.0
    %1358 = vmatpush1.msra.mxu0 %v1033
    %1359 = vmatprep.subr.mxu0 0.0
    %1360 = vmatpush1.msra.mxu0 %v1034
    %1361 = vmatprep.subr.mxu0 0.0
    %1362 = vmatpush1.msra.mxu0 %v1035
    %1363 = vmatprep.subr.mxu0 0.0
    %1364 = vmatpush1.msra.mxu0 %v1036
    %1365 = vmatprep.subr.mxu0 0.0
    %1366 = vmatpush1.msra.mxu0 %v1037
    %1367 = vmatprep.subr.mxu0 0.0
    %1368 = vmatpush1.msra.mxu0 0.0
    %1369 = vmatprep.subr.mxu0 0.0
    %1370 = vmatpush1.msra.mxu0 0.0
    %1371 = vmatprep.subr.mxu0 0.0
    %1372 = vmatpush1.msra.mxu0 0.0
    %1373 = vmatprep.subr.mxu0 0.0
    %1374 = vmatpush1.msra.mxu0 0.0
    %1375 = vmatprep.subr.mxu0 0.0
    %1376 = vmatpush1.msra.mxu0 0.0
    %1377 = vmatprep.subr.mxu0 0.0
    %1378 = vmatpush1.msra.mxu0 0.0
    %1379 = vmatprep.subr.mxu0 0.0
    %1380 = vmatpush1.msra.mxu0 0.0
    %1381 = vmatprep.subr.mxu0 0.0
    %1382 = vmatpush1.msra.mxu0 0.0
    %1383 = vmatprep.subr.mxu0 0.0
    %1384 = vmatpush1.msra.mxu0 0.0
    %1385 = vmatprep.subr.mxu0 0.0
    %1386 = vmatpush1.msra.mxu0 0.0
    %1387 = vmatprep.subr.mxu0 0.0
    %1388 = vmatpush1.msra.mxu0 0.0
    %1389 = vmatprep.subr.mxu0 0.0
    %1390 = vmatpush1.msra.mxu0 0.0
    %1391 = vmatprep.subr.mxu0 0.0
    %1392 = vmatpush1.msra.mxu0 0.0
    %1393 = vmatprep.subr.mxu0 0.0
    %1394 = vmatpush1.msra.mxu0 0.0
    %1395 = vmatprep.subr.mxu0 0.0
    %1396 = vmatpush1.msra.mxu0 0.0
    %1397 = vmatprep.subr.mxu0 0.0
    %1398 = vmatpush1.msra.mxu0 0.0
    %1399 = vmatprep.mubr.f32.mxu0 0.0
    %1400 = vmatmul.mubr.f32.gmra.mrb[0].mxu0 %v1332
    %v1401 = vpop.f32.mrb[0].mxu0
    %v1402 = vadd.f32 0.0, %v1401
    %v1403 = vpop.f32.mrb[0].mxu0
    %1404 = vdwg.mxu0
    %v1405 = vadd.f32 %v1334, %v1402
    %v1406 = vmax.f32 %v1405, 0.0
    %1407 = vst [vmem:[%s577] sm:$0xff] %v1406
    %v1408 = vld [vmem:[%s652] sm:$0xff]
    %1409 = vmatprep.subr.mxu0 0.0
    %1410 = vmatpush1.msra.mxu0 %v1022
    %1411 = vmatprep.subr.mxu0 0.0
    %1412 = vmatpush1.msra.mxu0 %v1023
    %1413 = vmatprep.subr.mxu0 0.0
    %1414 = vmatpush1.msra.mxu0 %v1024
    %1415 = vmatprep.subr.mxu0 0.0
    %1416 = vmatpush1.msra.mxu0 %v1025
    %1417 = vmatprep.subr.mxu0 0.0
    %1418 = vmatpush1.msra.mxu0 %v1026
    %1419 = vmatprep.subr.mxu0 0.0
    %1420 = vmatpush1.msra.mxu0 %v1027
    %1421 = vmatprep.subr.mxu0 0.0
    %1422 = vmatpush1.msra.mxu0 %v1028
    %1423 = vmatprep.subr.mxu0 0.0
    %1424 = vmatpush1.msra.mxu0 %v1029
    %1425 = vmatprep.subr.mxu0 0.0
    %1426 = vmatpush1.msra.mxu0 %v1030
    %1427 = vmatprep.subr.mxu0 0.0
    %1428 = vmatpush1.msra.mxu0 %v1031
    %1429 = vmatprep.subr.mxu0 0.0
    %1430 = vmatpush1.msra.mxu0 %v1032
    %1431 = vmatprep.subr.mxu0 0.0
    %1432 = vmatpush1.msra.mxu0 %v1033
    %1433 = vmatprep.subr.mxu0 0.0
    %1434 = vmatpush1.msra.mxu0 %v1034
    %1435 = vmatprep.subr.mxu0 0.0
    %1436 = vmatpush1.msra.mxu0 %v1035
    %1437 = vmatprep.subr.mxu0 0.0
    %1438 = vmatpush1.msra.mxu0 %v1036
    %1439 = vmatprep.subr.mxu0 0.0
    %1440 = vmatpush1.msra.mxu0 %v1037
    %1441 = vmatprep.subr.mxu0 0.0
    %1442 = vmatpush1.msra.mxu0 0.0
    %1443 = vmatprep.subr.mxu0 0.0
    %1444 = vmatpush1.msra.mxu0 0.0
    %1445 = vmatprep.subr.mxu0 0.0
    %1446 = vmatpush1.msra.mxu0 0.0
    %1447 = vmatprep.subr.mxu0 0.0
    %1448 = vmatpush1.msra.mxu0 0.0
    %1449 = vmatprep.subr.mxu0 0.0
    %1450 = vmatpush1.msra.mxu0 0.0
    %1451 = vmatprep.subr.mxu0 0.0
    %1452 = vmatpush1.msra.mxu0 0.0
    %1453 = vmatprep.subr.mxu0 0.0
    %1454 = vmatpush1.msra.mxu0 0.0
    %1455 = vmatprep.subr.mxu0 0.0
    %1456 = vmatpush1.msra.mxu0 0.0
    %1457 = vmatprep.subr.mxu0 0.0
    %1458 = vmatpush1.msra.mxu0 0.0
    %1459 = vmatprep.subr.mxu0 0.0
    %1460 = vmatpush1.msra.mxu0 0.0
    %1461 = vmatprep.subr.mxu0 0.0
    %1462 = vmatpush1.msra.mxu0 0.0
    %1463 = vmatprep.subr.mxu0 0.0
    %1464 = vmatpush1.msra.mxu0 0.0
    %1465 = vmatprep.subr.mxu0 0.0
    %1466 = vmatpush1.msra.mxu0 0.0
    %1467 = vmatprep.subr.mxu0 0.0
    %1468 = vmatpush1.msra.mxu0 0.0
    %1469 = vmatprep.subr.mxu0 0.0
    %1470 = vmatpush1.msra.mxu0 0.0
    %1471 = vmatprep.subr.mxu0 0.0
    %1472 = vmatpush1.msra.mxu0 0.0
    %1473 = vmatprep.mubr.f32.mxu0 0.0
    %1474 = vmatmul.mubr.f32.gmra.mrb[0].mxu0 %v1406
    %v1475 = vpop.f32.mrb[0].mxu0
    %v1476 = vadd.f32 0.0, %v1475
    %v1477 = vpop.f32.mrb[0].mxu0
    %1478 = vdwg.mxu0
    %v1479 = vadd.f32 %v1408, %v1476
    %v1480 = vmax.f32 %v1479, 0.0
    %1481 = vst [vmem:[%s652] sm:$0xff] %v1480
    %v1482 = vld [vmem:[%s727] sm:$0xff]
    %1483 = vmatprep.subr.mxu0 0.0
    %1484 = vmatpush1.msra.mxu0 %v1022
    %1485 = vmatprep.subr.mxu0 0.0
    %1486 = vmatpush1.msra.mxu0 %v1023
    %1487 = vmatprep.subr.mxu0 0.0
    %1488 = vmatpush1.msra.mxu0 %v1024
    %1489 = vmatprep.subr.mxu0 0.0
    %1490 = vmatpush1.msra.mxu0 %v1025
    %1491 = vmatprep.subr.mxu0 0.0
    %1492 = vmatpush1.msra.mxu0 %v1026
    %1493 = vmatprep.subr.mxu0 0.0
    %1494 = vmatpush1.msra.mxu0 %v1027
    %1495 = vmatprep.subr.mxu0 0.0
    %1496 = vmatpush1.msra.mxu0 %v1028
    %1497 = vmatprep.subr.mxu0 0.0
    %1498 = vmatpush1.msra.mxu0 %v1029
    %1499 = vmatprep.subr.mxu0 0.0
    %1500 = vmatpush1.msra.mxu0 %v1030
    %1501 = vmatprep.subr.mxu0 0.0
    %1502 = vmatpush1.msra.mxu0 %v1031
    %1503 = vmatprep.subr.mxu0 0.0
    %1504 = vmatpush1.msra.mxu0 %v1032
    %1505 = vmatprep.subr.mxu0 0.0
    %1506 = vmatpush1.msra.mxu0 %v1033
    %1507 = vmatprep.subr.mxu0 0.0
    %1508 = vmatpush1.msra.mxu0 %v1034
    %1509 = vmatprep.subr.mxu0 0.0
    %1510 = vmatpush1.msra.mxu0 %v1035
    %1511 = vmatprep.subr.mxu0 0.0
    %1512 = vmatpush1.msra.mxu0 %v1036
    %1513 = vmatprep.subr.mxu0 0.0
    %1514 = vmatpush1.msra.mxu0 %v1037
    %1515 = vmatprep.subr.mxu0 0.0
    %1516 = vmatpush1.msra.mxu0 0.0
    %1517 = vmatprep.subr.mxu0 0.0
    %1518 = vmatpush1.msra.mxu0 0.0
    %1519 = vmatprep.subr.mxu0 0.0
    %1520 = vmatpush1.msra.mxu0 0.0
    %1521 = vmatprep.subr.mxu0 0.0
    %1522 = vmatpush1.msra.mxu0 0.0
    %1523 = vmatprep.subr.mxu0 0.0
    %1524 = vmatpush1.msra.mxu0 0.0
    %1525 = vmatprep.subr.mxu0 0.0
    %1526 = vmatpush1.msra.mxu0 0.0
    %1527 = vmatprep.subr.mxu0 0.0
    %1528 = vmatpush1.msra.mxu0 0.0
    %1529 = vmatprep.subr.mxu0 0.0
    %1530 = vmatpush1.msra.mxu0 0.0
    %1531 = vmatprep.subr.mxu0 0.0
    %1532 = vmatpush1.msra.mxu0 0.0
    %1533 = vmatprep.subr.mxu0 0.0
    %1534 = vmatpush1.msra.mxu0 0.0
    %1535 = vmatprep.subr.mxu0 0.0
    %1536 = vmatpush1.msra.mxu0 0.0
    %1537 = vmatprep.subr.mxu0 0.0
    %1538 = vmatpush1.msra.mxu0 0.0
    %1539 = vmatprep.subr.mxu0 0.0
    %1540 = vmatpush1.msra.mxu0 0.0
    %1541 = vmatprep.subr.mxu0 0.0
    %1542 = vmatpush1.msra.mxu0 0.0
    %1543 = vmatprep.subr.mxu0 0.0
    %1544 = vmatpush1.msra.mxu0 0.0
    %1545 = vmatprep.subr.mxu0 0.0
    %1546 = vmatpush1.msra.mxu0 0.0
    %1547 = vmatprep.mubr.f32.mxu0 0.0
    %1548 = vmatmul.mubr.f32.gmra.mrb[0].mxu0 %v1480
    %v1549 = vpop.f32.mrb[0].mxu0
    %v1550 = vadd.f32 0.0, %v1549
    %v1551 = vpop.f32.mrb[0].mxu0
    %1552 = vdwg.mxu0
    %v1553 = vadd.f32 %v1482, %v1550
    %v1554 = vmax.f32 %v1553, 0.0
    %1555 = vst [vmem:[%s727] sm:$0xff] %v1554
    %v1556 = vld [vmem:[%s802] sm:$0xff]
    %1557 = vmatprep.subr.mxu0 0.0
    %1558 = vmatpush1.msra.mxu0 %v1022
    %1559 = vmatprep.subr.mxu0 0.0
    %1560 = vmatpush1.msra.mxu0 %v1023
    %1561 = vmatprep.subr.mxu0 0.0
    %1562 = vmatpush1.msra.mxu0 %v1024
    %1563 = vmatprep.subr.mxu0 0.0
    %1564 = vmatpush1.msra.mxu0 %v1025
    %1565 = vmatprep.subr.mxu0 0.0
    %1566 = vmatpush1.msra.mxu0 %v1026
    %1567 = vmatprep.subr.mxu0 0.0
    %1568 = vmatpush1.msra.mxu0 %v1027
    %1569 = vmatprep.subr.mxu0 0.0
    %1570 = vmatpush1.msra.mxu0 %v1028
    %1571 = vmatprep.subr.mxu0 0.0
    %1572 = vmatpush1.msra.mxu0 %v1029
    %1573 = vmatprep.subr.mxu0 0.0
    %1574 = vmatpush1.msra.mxu0 %v1030
    %1575 = vmatprep.subr.mxu0 0.0
    %1576 = vmatpush1.msra.mxu0 %v1031
    %1577 = vmatprep.subr.mxu0 0.0
    %1578 = vmatpush1.msra.mxu0 %v1032
    %1579 = vmatprep.subr.mxu0 0.0
    %1580 = vmatpush1.msra.mxu0 %v1033
    %1581 = vmatprep.subr.mxu0 0.0
    %1582 = vmatpush1.msra.mxu0 %v1034
    %1583 = vmatprep.subr.mxu0 0.0
    %1584 = vmatpush1.msra.mxu0 %v1035
    %1585 = vmatprep.subr.mxu0 0.0
    %1586 = vmatpush1.msra.mxu0 %v1036
    %1587 = vmatprep.subr.mxu0 0.0
    %1588 = vmatpush1.msra.mxu0 %v1037
    %1589 = vmatprep.subr.mxu0 0.0
    %1590 = vmatpush1.msra.mxu0 0.0
    %1591 = vmatprep.subr.mxu0 0.0
    %1592 = vmatpush1.msra.mxu0 0.0
    %1593 = vmatprep.subr.mxu0 0.0
    %1594 = vmatpush1.msra.mxu0 0.0
    %1595 = vmatprep.subr.mxu0 0.0
    %1596 = vmatpush1.msra.mxu0 0.0
    %1597 = vmatprep.subr.mxu0 0.0
    %1598 = vmatpush1.msra.mxu0 0.0
    %1599 = vmatprep.subr.mxu0 0.0
    %1600 = vmatpush1.msra.mxu0 0.0
    %1601 = vmatprep.subr.mxu0 0.0
    %1602 = vmatpush1.msra.mxu0 0.0
    %1603 = vmatprep.subr.mxu0 0.0
    %1604 = vmatpush1.msra.mxu0 0.0
    %1605 = vmatprep.subr.mxu0 0.0
    %1606 = vmatpush1.msra.mxu0 0.0
    %1607 = vmatprep.subr.mxu0 0.0
    %1608 = vmatpush1.msra.mxu0 0.0
    %1609 = vmatprep.subr.mxu0 0.0
    %1610 = vmatpush1.msra.mxu0 0.0
    %1611 = vmatprep.subr.mxu0 0.0
    %1612 = vmatpush1.msra.mxu0 0.0
    %1613 = vmatprep.subr.mxu0 0.0
    %1614 = vmatpush1.msra.mxu0 0.0
    %1615 = vmatprep.subr.mxu0 0.0
    %1616 = vmatpush1.msra.mxu0 0.0
    %1617 = vmatprep.subr.mxu0 0.0
    %1618 = vmatpush1.msra.mxu0 0.0
    %1619 = vmatprep.subr.mxu0 0.0
    %1620 = vmatpush1.msra.mxu0 0.0
    %1621 = vmatprep.mubr.f32.mxu0 0.0
    %1622 = vmatmul.mubr.f32.gmra.mrb[0].mxu0 %v1554
    %v1623 = vpop.f32.mrb[0].mxu0
    %v1624 = vadd.f32 0.0, %v1623
    %v1625 = vpop.f32.mrb[0].mxu0
    %1626 = vdwg.mxu0
    %v1627 = vadd.f32 %v1556, %v1624
    %v1628 = vmax.f32 %v1627, 0.0
    %1629 = vst [vmem:[%s802] sm:$0xff] %v1628
    %s1630 = scalar_lea.vmem [#allocation15], 8
    %1631 = vst [vmem:[%s1630] sm:$0xff] %v1628
    %v1632 = vld [vmem:[#allocation2] sm:$0xff]
    %v1633 = vld [vmem:[#allocation2 + $0x8] sm:$0xff]
    %v1634 = vld [vmem:[#allocation2 + $0x10] sm:$0xff]
    %v1635 = vld [vmem:[#allocation2 + $0x18] sm:$0xff]
    %v1636 = vld [vmem:[#allocation2 + $0x20] sm:$0xff]
    %v1637 = vld [vmem:[#allocation2 + $0x28] sm:$0xff]
    %v1638 = vld [vmem:[#allocation2 + $0x30] sm:$0xff]
    %v1639 = vld [vmem:[#allocation2 + $0x38] sm:$0xff]
    %v1640 = vld [vmem:[#allocation12] sm:$0xff]
    %v1641 = vld [vmem:[#allocation12 + $0x8] sm:$0xff]
    %v1642 = vld [vmem:[#allocation12 + $0x10] sm:$0xff]
    %v1643 = vld [vmem:[#allocation12 + $0x18] sm:$0xff]
    %v1644 = vld [vmem:[#allocation12 + $0x20] sm:$0xff]
    %v1645 = vld [vmem:[#allocation12 + $0x28] sm:$0xff]
    %v1646 = vld [vmem:[#allocation12 + $0x30] sm:$0xff]
    %v1647 = vld [vmem:[#allocation12 + $0x38] sm:$0xff]
    %v1648 = vld [vmem:[#allocation12 + $0x40] sm:$0xff]
    %v1649 = vld [vmem:[#allocation12 + $0x48] sm:$0xff]
    %v1650 = vld [vmem:[#allocation12 + $0x50] sm:$0xff]
    %v1651 = vld [vmem:[#allocation12 + $0x58] sm:$0xff]
    %v1652 = vld [vmem:[#allocation12 + $0x60] sm:$0xff]
    %v1653 = vld [vmem:[#allocation12 + $0x68] sm:$0xff]
    %v1654 = vld [vmem:[#allocation12 + $0x70] sm:$0xff]
    %v1655 = vld [vmem:[#allocation12 + $0x78] sm:$0xff]
    %v1656 = vld [vmem:[%s8] sm:$0x1]
    %v1658 = vlaneseq
    %v1659 = vshrl.u32 %v1658, 7
    %v1660 = vsub.s32 0, %v1659
    %v1661 = vrot.slane %v1656, %v1660
    %1663 = vmatprep.subr.mxu0 0.0
    %1664 = vmatpush1.msra.mxu0 %v1640
    %1665 = vmatprep.subr.mxu0 0.0
    %1666 = vmatpush1.msra.mxu0 %v1641
    %1667 = vmatprep.subr.mxu0 0.0
    %1668 = vmatpush1.msra.mxu0 %v1642
    %1669 = vmatprep.subr.mxu0 0.0
    %1670 = vmatpush1.msra.mxu0 %v1643
    %1671 = vmatprep.subr.mxu0 0.0
    %1672 = vmatpush1.msra.mxu0 %v1644
    %1673 = vmatprep.subr.mxu0 0.0
    %1674 = vmatpush1.msra.mxu0 %v1645
    %1675 = vmatprep.subr.mxu0 0.0
    %1676 = vmatpush1.msra.mxu0 %v1646
    %1677 = vmatprep.subr.mxu0 0.0
    %1678 = vmatpush1.msra.mxu0 %v1647
    %1679 = vmatprep.subr.mxu0 0.0
    %1680 = vmatpush1.msra.mxu0 %v1648
    %1681 = vmatprep.subr.mxu0 0.0
    %1682 = vmatpush1.msra.mxu0 %v1649
    %1683 = vmatprep.subr.mxu0 0.0
    %1684 = vmatpush1.msra.mxu0 %v1650
    %1685 = vmatprep.subr.mxu0 0.0
    %1686 = vmatpush1.msra.mxu0 %v1651
    %1687 = vmatprep.subr.mxu0 0.0
    %1688 = vmatpush1.msra.mxu0 %v1652
    %1689 = vmatprep.subr.mxu0 0.0
    %1690 = vmatpush1.msra.mxu0 %v1653
    %1691 = vmatprep.subr.mxu0 0.0
    %1692 = vmatpush1.msra.mxu0 %v1654
    %1693 = vmatprep.subr.mxu0 0.0
    %1694 = vmatpush1.msra.mxu0 %v1655
    %1695 = vmatprep.subr.mxu0 0.0
    %1696 = vmatpush1.msra.mxu0 0.0
    %1697 = vmatprep.subr.mxu0 0.0
    %1698 = vmatpush1.msra.mxu0 0.0
    %1699 = vmatprep.subr.mxu0 0.0
    %1700 = vmatpush1.msra.mxu0 0.0
    %1701 = vmatprep.subr.mxu0 0.0
    %1702 = vmatpush1.msra.mxu0 0.0
    %1703 = vmatprep.subr.mxu0 0.0
    %1704 = vmatpush1.msra.mxu0 0.0
    %1705 = vmatprep.subr.mxu0 0.0
    %1706 = vmatpush1.msra.mxu0 0.0
    %1707 = vmatprep.subr.mxu0 0.0
    %1708 = vmatpush1.msra.mxu0 0.0
    %1709 = vmatprep.subr.mxu0 0.0
    %1710 = vmatpush1.msra.mxu0 0.0
    %1711 = vmatprep.subr.mxu0 0.0
    %1712 = vmatpush1.msra.mxu0 0.0
    %1713 = vmatprep.subr.mxu0 0.0
    %1714 = vmatpush1.msra.mxu0 0.0
    %1715 = vmatprep.subr.mxu0 0.0
    %1716 = vmatpush1.msra.mxu0 0.0
    %1717 = vmatprep.subr.mxu0 0.0
    %1718 = vmatpush1.msra.mxu0 0.0
    %1719 = vmatprep.subr.mxu0 0.0
    %1720 = vmatpush1.msra.mxu0 0.0
    %1721 = vmatprep.subr.mxu0 0.0
    %1722 = vmatpush1.msra.mxu0 0.0
    %1723 = vmatprep.subr.mxu0 0.0
    %1724 = vmatpush1.msra.mxu0 0.0
    %1725 = vmatprep.subr.mxu0 0.0
    %1726 = vmatpush1.msra.mxu0 0.0
    %1727 = vmatprep.mubr.f32.mxu0 0.0
    %1728 = vmatmul.mubr.f32.gmra.mrb[0].mxu0 %v1632
    %v1729 = vpop.f32.mrb[0].mxu0
    %v1730 = vadd.f32 %v1661, %v1729
    %v1731 = vpop.f32.mrb[0].mxu0
    %1732 = vmatprep.mubr.f32.mxu0 0.0
    %1733 = vmatmul.mubr.f32.gmra.mrb[0].mxu0 %v1633
    %v1734 = vpop.f32.mrb[0].mxu0
    %v1735 = vadd.f32 %v1661, %v1734
    %v1736 = vpop.f32.mrb[0].mxu0
    %1737 = vmatprep.mubr.f32.mxu0 0.0
    %1738 = vmatmul.mubr.f32.gmra.mrb[0].mxu0 %v1634
    %v1739 = vpop.f32.mrb[0].mxu0
    %v1740 = vadd.f32 %v1661, %v1739
    %v1741 = vpop.f32.mrb[0].mxu0
    %1742 = vmatprep.mubr.f32.mxu0 0.0
    %1743 = vmatmul.mubr.f32.gmra.mrb[0].mxu0 %v1635
    %v1744 = vpop.f32.mrb[0].mxu0
    %v1745 = vadd.f32 %v1661, %v1744
    %v1746 = vpop.f32.mrb[0].mxu0
    %1747 = vmatprep.mubr.f32.mxu0 0.0
    %1748 = vmatmul.mubr.f32.gmra.mrb[0].mxu0 %v1636
    %v1749 = vpop.f32.mrb[0].mxu0
    %v1750 = vadd.f32 %v1661, %v1749
    %v1751 = vpop.f32.mrb[0].mxu0
    %1752 = vmatprep.mubr.f32.mxu0 0.0
    %1753 = vmatmul.mubr.f32.gmra.mrb[0].mxu0 %v1637
    %v1754 = vpop.f32.mrb[0].mxu0
    %v1755 = vadd.f32 %v1661, %v1754
    %v1756 = vpop.f32.mrb[0].mxu0
    %1757 = vmatprep.mubr.f32.mxu0 0.0
    %1758 = vmatmul.mubr.f32.gmra.mrb[0].mxu0 %v1638
    %v1759 = vpop.f32.mrb[0].mxu0
    %v1760 = vadd.f32 %v1661, %v1759
    %v1761 = vpop.f32.mrb[0].mxu0
    %1762 = vmatprep.mubr.f32.mxu0 0.0
    %1763 = vmatmul.mubr.f32.gmra.mrb[0].mxu0 %v1639
    %v1764 = vpop.f32.mrb[0].mxu0
    %v1765 = vadd.f32 %v1661, %v1764
    %v1766 = vpop.f32.mrb[0].mxu0
    %1767 = vdwg.mxu0
    %1768 = vst [vmem:[#allocation14] sm:$0xff] %v1730
    %1769 = vst [vmem:[#allocation14 + $0x8] sm:$0xff] %v1735
    %1770 = vst [vmem:[#allocation14 + $0x10] sm:$0xff] %v1740
    %1771 = vst [vmem:[#allocation14 + $0x18] sm:$0xff] %v1745
    %1772 = vst [vmem:[#allocation14 + $0x20] sm:$0xff] %v1750
    %1773 = vst [vmem:[#allocation14 + $0x28] sm:$0xff] %v1755
    %1774 = vst [vmem:[#allocation14 + $0x30] sm:$0xff] %v1760
    %1775 = vst [vmem:[#allocation14 + $0x38] sm:$0xff] %v1765
    // Predicated region
    $region62: #{tpu_custom_call.1} parent=1 // pred_check
      _
    $region63: #{tpu_custom_call.1} parent=1 // pred_check_branch
      %1777 = sbr.rel (0) target = $region65
    $region64: #{tpu_custom_call.1} parent=1 // pred_region
      %s1779 = ssub.s32 1024, 1024
      %1780 = vsyncadd [#allocation5], %s1779
      %s1781 = sshll.u32 [#allocation14], 4
      %s1782 = int_to_ptr.vmem [resolvable:$true] %s1781
      %1787 = dma.vmem_to_hbm [thread:$0]  %s1782, 1024, %s9, [#allocation5], 128, 128, 8
    $region65: #{tpu_custom_call.1} parent=1 // pred_fallthru
      _
    // Predicated region
    $region66: #{tpu_custom_call.1} parent=1 // pred_check
      _
    $region67: #{tpu_custom_call.1} parent=1 // pred_check_branch
      %1789 = sbr.rel (0) target = $region69
    $region68: #{tpu_custom_call.1} parent=1 // pred_region
      %s1791 = ssub.s32 256, 256
      %1792 = vsyncadd [#allocation16], %s1791
      %s1793 = sshll.u32 [#allocation15], 4
      %s1794 = int_to_ptr.vmem [resolvable:$true] %s1793
      %1799 = dma.vmem_to_hbm [thread:$0]  %s1794, 256, %s10, [#allocation16], 128, 128, 8
    $region69: #{tpu_custom_call.1} parent=1 // pred_fallthru
      _
    // Predicated region
    $region70: #{tpu_custom_call.1} parent=1 // pred_check
      _
    $region71: #{tpu_custom_call.1} parent=1 // pred_check_branch
      %1801 = sbr.rel (0) target = $region73
    $region72: #{tpu_custom_call.1} parent=1 // pred_region
      %1802 = dma.done [#allocation5], 1024
    $region73: #{tpu_custom_call.1} parent=1 // pred_fallthru
      _
    // Predicated region
    $region74: #{tpu_custom_call.1} parent=1 // pred_check
      _
    $region75: #{tpu_custom_call.1} parent=1 // pred_check_branch
      %1804 = sbr.rel (0) target = $region77
    $region76: #{tpu_custom_call.1} parent=1 // pred_region
      %1805 = dma.done [#allocation16], 256
    $region77: #{tpu_custom_call.1} parent=1 // pred_fallthru
      _
    %1806 = vsyncpa [#allocation4], 1
    %1807 = vsyncpa [#allocation7], 1
    %1808 = vsyncpa [#allocation10], 1
    %1809 = vsyncpa [#allocation13], 1
    %1810 = vsyncpa [#allocation5], 1
    %1811 = vsyncpa [#allocation16], 1

</llo_original>
